<compile_context>
chip_gen: v7x
topology: tpu7x:2x2x1
jax: 0.10.0
libtpu: 0.0.40
codegen_flags: <defaults>
</compile_context>

<pallas_src>
import functools

import numpy as np
import jax
import jax.numpy as jnp
from jax.experimental import pallas as pl
from jax.experimental.pallas import tpu as pltpu

MAX_SEQ = 128     # original: 700 (pad to 768 when restoring)
GDIM = 128        # original: 512
NCLS = 21         # nn.Linear(1, 21) output classes
BATCH = 1024      # demo batch: grid=(4,) -> 2 steps per v7x core
TILE_B = 256      # rows per grid step (MXU M dimension)
HEAD_ROWS = 64    # row-chunk for the fused W4-matmul + envelope head
LEAK = 0.1


def _leaky_relu(x):
    return jnp.where(x >= 0, x, LEAK * x)


def build_envelope(lin_w, lin_b):
    """Host-side preprocessing of nn.Linear(1, 21).

    Computes the upper envelope of the lines f_k(y) = lin_w[k]*y + lin_b[k] and
    returns (thresholds, deltas) with thresholds[0] == -inf so that
        argmax_k f_k(y) == sum_j (y > thresholds[j]) * deltas[j]
    for every y not exactly on a breakpoint (ties are measure-zero and covered
    by the validation tolerance).
    """
    w = np.asarray(lin_w, np.float64)
    b = np.asarray(lin_b, np.float64)
    n = w.shape[0]
    # Sort by slope ascending; for equal slopes keep the highest intercept and,
    # on full ties, the lowest class index (matches torch.argmax tie-breaking).
    order = sorted(range(n), key=lambda k: (w[k], -b[k], k))
    cand = []
    for k in order:
        if cand and w[k] == w[cand[-1]]:
            continue                                  # dominated duplicate slope
        cand.append(k)

    def isect(i, j):                                  # y where line i == line j
        return (b[i] - b[j]) / (w[j] - w[i])

    hull = []                                         # convex-hull-trick stack
    for k in cand:
        while len(hull) >= 2 and isect(hull[-2], k) <= isect(hull[-2], hull[-1]):
            hull.pop()
        hull.append(k)

    thresholds = [-np.inf] + [isect(hull[j - 1], hull[j]) for j in range(1, len(hull))]
    deltas = [hull[0]] + [hull[j] - hull[j - 1] for j in range(1, len(hull))]
    return (np.asarray(thresholds, np.float32), np.asarray(deltas, np.int32))


def generator_kernel(thr_ref, dlt_ref,               # SMEM: (NB,) f32 / int32
                     noise_ref,                      # (TB, S) f32
                     w1_ref, b1_ref,                 # (S, G) bf16, (1, G) f32
                     w2_ref, b2_ref,                 # (G, G) bf16, (1, G) f32
                     w3_ref, b3_ref,                 # (G, G) bf16, (1, G) f32
                     w4_ref, b4_ref,                 # (G, S) bf16, (1, S) f32
                     out_ref):                       # (TB, S) int32
    bf16 = jnp.bfloat16
    f32 = jnp.float32

    # ---- MLP trunk: bf16 operands, f32 accumulation, f32 elementwise. ----
    x = noise_ref[...].astype(bf16)
    h = jnp.dot(x, w1_ref[...], preferred_element_type=f32) + b1_ref[...]
    h = _leaky_relu(h)
    h = jnp.dot(h.astype(bf16), w2_ref[...], preferred_element_type=f32) + b2_ref[...]
    h = _leaky_relu(h)
    h = jnp.dot(h.astype(bf16), w3_ref[...], preferred_element_type=f32) + b3_ref[...]
    h = _leaky_relu(h)
    # TODO(synk): Dropout(p=0.5) is identity in eval mode; training-mode dropout
    # would mask here via pltpu.prng_seed / pltpu.prng_random_bits.
    h_b = h.astype(bf16)

    # ---- Head: Linear(1,21) -> softmax -> argmax as an upper envelope. -----
    # Hoist the (at most 2*21) SMEM scalar reads out of the chunk loop.
    nb = thr_ref.shape[0]
    thr = [thr_ref[j] for j in range(nb)]
    dlt = [dlt_ref[j] for j in range(nb)]

    tb = out_ref.shape[0]
    # Row-chunked and fully unrolled (static Python loop, static slices): the
    # scheduler overlaps chunk c+1's MXU matmul with chunk c's VALU envelope
    # and int32 store; no y VMEM round-trip.
    for c in range(tb // HEAD_ROWS):
        r0, r1 = c * HEAD_ROWS, (c + 1) * HEAD_ROWS
        y = jnp.dot(h_b[r0:r1, :], w4_ref[...],
                    preferred_element_type=f32) + b4_ref[...]
        # thresholds[0] == -inf  =>  leftmost envelope segment's class id.
        idx = jnp.full(y.shape, dlt[0], dtype=jnp.int32)
        for j in range(1, nb):                        # static unrolled, nb <= 21
            idx = idx + jnp.where(y > thr[j], dlt[j], 0)
        out_ref[r0:r1, :] = idx


@functools.partial(jax.jit, static_argnames=("tile_b",))
def generator_forward(noise, trunk_params, env_thr, env_dlt, tile_b=TILE_B):
    """noise: (B, S) f32 -> (B, S) int32 class indices."""
    w1, b1, w2, b2, w3, b3, w4, b4 = trunk_params
    B, S = noise.shape
    G = w1.shape[1]
    assert w1.shape[0] == S and w4.shape == (G, S)
    assert B % tile_b == 0 and tile_b % HEAD_ROWS == 0

    bf16 = jnp.bfloat16
    w1b, w2b, w3b, w4b = (w.astype(bf16) for w in (w1, w2, w3, w4))

    full = lambda i: (0, 0)   # weights stay VMEM-resident across batch grid steps
    # TODO(synk): at real 700x512 sizes on v7x (64 MiB VMEM/TC), consider
    # pipeline_mode=pl.Buffered(1) on these constant-index weight specs to
    # reclaim their second pipeline buffer.
    return pl.pallas_call(
        generator_kernel,
        out_shape=jax.ShapeDtypeStruct((B, S), jnp.int32),
        grid=(B // tile_b,),
        in_specs=[
            pl.BlockSpec(memory_space=pltpu.SMEM),               # envelope thresholds
            pl.BlockSpec(memory_space=pltpu.SMEM),               # envelope class deltas
            pl.BlockSpec((tile_b, S), lambda i: (i, 0)),          # noise
            pl.BlockSpec((S, G), full), pl.BlockSpec((1, G), full),   # w1, b1
            pl.BlockSpec((G, G), full), pl.BlockSpec((1, G), full),   # w2, b2
            pl.BlockSpec((G, G), full), pl.BlockSpec((1, G), full),   # w3, b3
            pl.BlockSpec((G, S), full), pl.BlockSpec((1, S), full),   # w4, b4
        ],
        out_specs=pl.BlockSpec((tile_b, S), lambda i: (i, 0)),
        compiler_params=pltpu.CompilerParams(
            dimension_semantics=("parallel",),
            vmem_limit_bytes=32 * 1024 * 1024,
        ),
    )(env_thr, env_dlt, noise, w1b, b1, w2b, b2, w3b, b3, w4b, b4)


def init_params(key):
    """Deterministic init mimicking nn.Linear default (U[-1/sqrt(fan_in), +])."""
    def linear(key, fan_in, fan_out):
        kw, kb = jax.random.split(key)
        bound = 1.0 / jnp.sqrt(fan_in)
        w = jax.random.uniform(kw, (fan_in, fan_out), jnp.float32, -bound, bound)
        b = jax.random.uniform(kb, (1, fan_out), jnp.float32, -bound, bound)
        return w, b

    k1, k2, k3, k4, k5 = jax.random.split(key, 5)
    w1, b1 = linear(k1, MAX_SEQ, GDIM)
    w2, b2 = linear(k2, GDIM, GDIM)
    w3, b3 = linear(k3, GDIM, GDIM)
    w4, b4 = linear(k4, GDIM, MAX_SEQ)
    lw2d, lb2d = linear(k5, 1, NCLS)          # nn.Linear(1, 21)
    lin_w = lw2d.reshape(NCLS)                # weight (21, 1) flattened
    lin_b = lb2d.reshape(NCLS)
    return (w1, b1, w2, b2, w3, b3, w4, b4, lin_w, lin_b)


def _reference(noise, params):
    """Pure-JAX reference mirroring the kernel's dtype policy (bf16 matmuls),
    but using the direct Linear(1,21) -> softmax -> argmax head."""
    (w1, b1, w2, b2, w3, b3, w4, b4, lin_w, lin_b) = params
    bf16 = jnp.bfloat16

    def lin(x, w, b):
        return jnp.dot(x.astype(bf16), w.astype(bf16),
                       preferred_element_type=jnp.float32) + b

    h = jax.nn.leaky_relu(lin(noise, w1, b1), LEAK)
    h = jax.nn.leaky_relu(lin(h, w2, b2), LEAK)
    h = jax.nn.leaky_relu(lin(h, w3, b3), LEAK)
    y = lin(h, w4, b4)
    logits = y[..., None] * lin_w + lin_b          # (B, S, 21)
    probs = jax.nn.softmax(logits, axis=-1)
    return jnp.argmax(probs, axis=-1).astype(jnp.int32)


if __name__ == "__main__":
    key = jax.random.PRNGKey(0)
    k_noise, k_params = jax.random.split(key)

    noise = jax.random.normal(k_noise, (BATCH, MAX_SEQ), jnp.float32)
    params = init_params(k_params)
    trunk, lin_w, lin_b = params[:8], params[8], params[9]

    # Host-side envelope preprocessing of the 21-class head.
    env_thr, env_dlt = build_envelope(np.asarray(lin_w), np.asarray(lin_b))

    out = jax.block_until_ready(
        generator_forward(noise, trunk, jnp.asarray(env_thr), jnp.asarray(env_dlt)))
    ref = _reference(noise, params)

    assert out.shape == (BATCH, MAX_SEQ) and out.dtype == jnp.int32
    # Accumulation-order differences between the Pallas MXU dot and the XLA
    # reference dot (and breakpoint rounding in the envelope head) can flip the
    # argmax only for elements landing essentially on a class boundary;
    # tolerate a vanishing fraction of such ties.
    mismatch = float(jnp.mean((out != ref).astype(jnp.float32)))
    assert mismatch <= 1e-3, f"Pallas vs reference mismatch fraction {mismatch}"
    print("KERNEL_OK")
</pallas_src>

<mosaic_0001>
module attributes {stable_mosaic.version = 11 : i64} {
  func.func @generator_kernel(%arg0: i32, %arg1: memref<5xf32, #tpu.memory_space<smem>>, %arg2: memref<5xi32, #tpu.memory_space<smem>>, %arg3: memref<256x128xf32, #tpu.memory_space<vmem>>, %arg4: memref<128x128xbf16, #tpu.memory_space<vmem>>, %arg5: memref<1x128xf32, #tpu.memory_space<vmem>>, %arg6: memref<128x128xbf16, #tpu.memory_space<vmem>>, %arg7: memref<1x128xf32, #tpu.memory_space<vmem>>, %arg8: memref<128x128xbf16, #tpu.memory_space<vmem>>, %arg9: memref<1x128xf32, #tpu.memory_space<vmem>>, %arg10: memref<128x128xbf16, #tpu.memory_space<vmem>>, %arg11: memref<1x128xf32, #tpu.memory_space<vmem>>, %arg12: memref<256x128xi32, #tpu.memory_space<vmem>>) attributes {dimension_semantics = [#tpu.dimension_semantics<parallel>], iteration_bounds = array<i64: 4>, scalar_prefetch = 0 : i64, scratch_operands = 0 : i64, tpu.core_type = #tpu.core_type<tc>, window_params = [{transform_indices = @transform_0, window_bounds = array<i64: 5>}, {transform_indices = @transform_1, window_bounds = array<i64: 5>}, {transform_indices = @transform_2, window_bounds = array<i64: 256, 128>}, {pipeline_mode = #tpu.pipeline_mode<synchronous>, transform_indices = @transform_3, window_bounds = array<i64: 128, 128>}, {pipeline_mode = #tpu.pipeline_mode<synchronous>, transform_indices = @transform_4, window_bounds = array<i64: 1, 128>}, {pipeline_mode = #tpu.pipeline_mode<synchronous>, transform_indices = @transform_5, window_bounds = array<i64: 128, 128>}, {pipeline_mode = #tpu.pipeline_mode<synchronous>, transform_indices = @transform_6, window_bounds = array<i64: 1, 128>}, {pipeline_mode = #tpu.pipeline_mode<synchronous>, transform_indices = @transform_7, window_bounds = array<i64: 128, 128>}, {pipeline_mode = #tpu.pipeline_mode<synchronous>, transform_indices = @transform_8, window_bounds = array<i64: 1, 128>}, {pipeline_mode = #tpu.pipeline_mode<synchronous>, transform_indices = @transform_9, window_bounds = array<i64: 128, 128>}, {pipeline_mode = #tpu.pipeline_mode<synchronous>, transform_indices = @transform_10, window_bounds = array<i64: 1, 128>}, {transform_indices = @transform_11, window_bounds = array<i64: 256, 128>}]} {
    %c0 = arith.constant 0 : index
    %c0_0 = arith.constant 0 : index
    %0 = vector.load %arg3[%c0, %c0_0] : memref<256x128xf32, #tpu.memory_space<vmem>>, vector<256x128xf32>
    %1 = arith.truncf %0 : vector<256x128xf32> to vector<256x128xbf16>
    %c0_1 = arith.constant 0 : index
    %c0_2 = arith.constant 0 : index
    %2 = vector.load %arg4[%c0_1, %c0_2] : memref<128x128xbf16, #tpu.memory_space<vmem>>, vector<128x128xbf16>
    %cst = arith.constant dense<0.000000e+00> : vector<256x128xf32>
    %3 = tpu.matmul %1, %2, %cst {dimension_numbers = #tpu.dot_dimension_numbers<[1], [0], [0], [1], [0, 0, 1, 1], [], []>} : vector<256x128xbf16>, vector<128x128xbf16>, vector<256x128xf32> -> vector<256x128xf32>
    %c0_3 = arith.constant 0 : index
    %c0_4 = arith.constant 0 : index
    %4 = vector.load %arg5[%c0_3, %c0_4] : memref<1x128xf32, #tpu.memory_space<vmem>>, vector<1x128xf32>
    %5 = vector.broadcast %4 : vector<1x128xf32> to vector<256x128xf32>
    %6 = arith.addf %3, %5 : vector<256x128xf32>
    %cst_5 = arith.constant 0.000000e+00 : f32
    %7 = vector.broadcast %cst_5 : f32 to vector<256x128xf32>
    %8 = arith.cmpf oge, %6, %7 : vector<256x128xf32>
    %cst_6 = arith.constant 1.000000e-01 : f32
    %9 = vector.broadcast %cst_6 : f32 to vector<256x128xf32>
    %10 = arith.mulf %9, %6 : vector<256x128xf32>
    %11 = arith.select %8, %6, %10 : vector<256x128xi1>, vector<256x128xf32>
    %12 = arith.truncf %11 : vector<256x128xf32> to vector<256x128xbf16>
    %c0_7 = arith.constant 0 : index
    %c0_8 = arith.constant 0 : index
    %13 = vector.load %arg6[%c0_7, %c0_8] : memref<128x128xbf16, #tpu.memory_space<vmem>>, vector<128x128xbf16>
    %cst_9 = arith.constant dense<0.000000e+00> : vector<256x128xf32>
    %14 = tpu.matmul %12, %13, %cst_9 {dimension_numbers = #tpu.dot_dimension_numbers<[1], [0], [0], [1], [0, 0, 1, 1], [], []>} : vector<256x128xbf16>, vector<128x128xbf16>, vector<256x128xf32> -> vector<256x128xf32>
    %c0_10 = arith.constant 0 : index
    %c0_11 = arith.constant 0 : index
    %15 = vector.load %arg7[%c0_10, %c0_11] : memref<1x128xf32, #tpu.memory_space<vmem>>, vector<1x128xf32>
    %16 = vector.broadcast %15 : vector<1x128xf32> to vector<256x128xf32>
    %17 = arith.addf %14, %16 : vector<256x128xf32>
    %cst_12 = arith.constant 0.000000e+00 : f32
    %18 = vector.broadcast %cst_12 : f32 to vector<256x128xf32>
    %19 = arith.cmpf oge, %17, %18 : vector<256x128xf32>
    %cst_13 = arith.constant 1.000000e-01 : f32
    %20 = vector.broadcast %cst_13 : f32 to vector<256x128xf32>
    %21 = arith.mulf %20, %17 : vector<256x128xf32>
    %22 = arith.select %19, %17, %21 : vector<256x128xi1>, vector<256x128xf32>
    %23 = arith.truncf %22 : vector<256x128xf32> to vector<256x128xbf16>
    %c0_14 = arith.constant 0 : index
    %c0_15 = arith.constant 0 : index
    %24 = vector.load %arg8[%c0_14, %c0_15] : memref<128x128xbf16, #tpu.memory_space<vmem>>, vector<128x128xbf16>
    %cst_16 = arith.constant dense<0.000000e+00> : vector<256x128xf32>
    %25 = tpu.matmul %23, %24, %cst_16 {dimension_numbers = #tpu.dot_dimension_numbers<[1], [0], [0], [1], [0, 0, 1, 1], [], []>} : vector<256x128xbf16>, vector<128x128xbf16>, vector<256x128xf32> -> vector<256x128xf32>
    %c0_17 = arith.constant 0 : index
    %c0_18 = arith.constant 0 : index
    %26 = vector.load %arg9[%c0_17, %c0_18] : memref<1x128xf32, #tpu.memory_space<vmem>>, vector<1x128xf32>
    %27 = vector.broadcast %26 : vector<1x128xf32> to vector<256x128xf32>
    %28 = arith.addf %25, %27 : vector<256x128xf32>
    %cst_19 = arith.constant 0.000000e+00 : f32
    %29 = vector.broadcast %cst_19 : f32 to vector<256x128xf32>
    %30 = arith.cmpf oge, %28, %29 : vector<256x128xf32>
    %cst_20 = arith.constant 1.000000e-01 : f32
    %31 = vector.broadcast %cst_20 : f32 to vector<256x128xf32>
    %32 = arith.mulf %31, %28 : vector<256x128xf32>
    %33 = arith.select %30, %28, %32 : vector<256x128xi1>, vector<256x128xf32>
    %34 = arith.truncf %33 : vector<256x128xf32> to vector<256x128xbf16>
    %c1 = arith.constant 1 : index
    %35 = memref.load %arg1[%c1] : memref<5xf32, #tpu.memory_space<smem>>
    %c2 = arith.constant 2 : index
    %36 = memref.load %arg1[%c2] : memref<5xf32, #tpu.memory_space<smem>>
    %c3 = arith.constant 3 : index
    %37 = memref.load %arg1[%c3] : memref<5xf32, #tpu.memory_space<smem>>
    %c4 = arith.constant 4 : index
    %38 = memref.load %arg1[%c4] : memref<5xf32, #tpu.memory_space<smem>>
    %c0_21 = arith.constant 0 : index
    %39 = memref.load %arg2[%c0_21] : memref<5xi32, #tpu.memory_space<smem>>
    %c1_22 = arith.constant 1 : index
    %40 = memref.load %arg2[%c1_22] : memref<5xi32, #tpu.memory_space<smem>>
    %c2_23 = arith.constant 2 : index
    %41 = memref.load %arg2[%c2_23] : memref<5xi32, #tpu.memory_space<smem>>
    %c3_24 = arith.constant 3 : index
    %42 = memref.load %arg2[%c3_24] : memref<5xi32, #tpu.memory_space<smem>>
    %c4_25 = arith.constant 4 : index
    %43 = memref.load %arg2[%c4_25] : memref<5xi32, #tpu.memory_space<smem>>
    %44 = vector.extract_strided_slice %34 {offsets = [0, 0], sizes = [64, 128], strides = [1, 1]} : vector<256x128xbf16> to vector<64x128xbf16>
    %c0_26 = arith.constant 0 : index
    %c0_27 = arith.constant 0 : index
    %45 = vector.load %arg10[%c0_26, %c0_27] : memref<128x128xbf16, #tpu.memory_space<vmem>>, vector<128x128xbf16>
    %cst_28 = arith.constant dense<0.000000e+00> : vector<64x128xf32>
    %46 = tpu.matmul %44, %45, %cst_28 {dimension_numbers = #tpu.dot_dimension_numbers<[1], [0], [0], [1], [0, 0, 1, 1], [], []>} : vector<64x128xbf16>, vector<128x128xbf16>, vector<64x128xf32> -> vector<64x128xf32>
    %c0_29 = arith.constant 0 : index
    %c0_30 = arith.constant 0 : index
    %47 = vector.load %arg11[%c0_29, %c0_30] : memref<1x128xf32, #tpu.memory_space<vmem>>, vector<1x128xf32>
    %48 = vector.broadcast %47 : vector<1x128xf32> to vector<64x128xf32>
    %49 = arith.addf %46, %48 : vector<64x128xf32>
    %50 = vector.broadcast %39 : i32 to vector<64x128xi32>
    %51 = vector.broadcast %35 : f32 to vector<64x128xf32>
    %52 = arith.cmpf ogt, %49, %51 : vector<64x128xf32>
    %c0_i32 = arith.constant 0 : i32
    %53 = vector.broadcast %40 : i32 to vector<64x128xi32>
    %54 = vector.broadcast %c0_i32 : i32 to vector<64x128xi32>
    %55 = arith.select %52, %53, %54 : vector<64x128xi1>, vector<64x128xi32>
    %56 = arith.addi %50, %55 : vector<64x128xi32>
    %57 = vector.broadcast %36 : f32 to vector<64x128xf32>
    %58 = arith.cmpf ogt, %49, %57 : vector<64x128xf32>
    %c0_i32_31 = arith.constant 0 : i32
    %59 = vector.broadcast %41 : i32 to vector<64x128xi32>
    %60 = vector.broadcast %c0_i32_31 : i32 to vector<64x128xi32>
    %61 = arith.select %58, %59, %60 : vector<64x128xi1>, vector<64x128xi32>
    %62 = arith.addi %56, %61 : vector<64x128xi32>
    %63 = vector.broadcast %37 : f32 to vector<64x128xf32>
    %64 = arith.cmpf ogt, %49, %63 : vector<64x128xf32>
    %c0_i32_32 = arith.constant 0 : i32
    %65 = vector.broadcast %42 : i32 to vector<64x128xi32>
    %66 = vector.broadcast %c0_i32_32 : i32 to vector<64x128xi32>
    %67 = arith.select %64, %65, %66 : vector<64x128xi1>, vector<64x128xi32>
    %68 = arith.addi %62, %67 : vector<64x128xi32>
    %69 = vector.broadcast %38 : f32 to vector<64x128xf32>
    %70 = arith.cmpf ogt, %49, %69 : vector<64x128xf32>
    %c0_i32_33 = arith.constant 0 : i32
    %71 = vector.broadcast %43 : i32 to vector<64x128xi32>
    %72 = vector.broadcast %c0_i32_33 : i32 to vector<64x128xi32>
    %73 = arith.select %70, %71, %72 : vector<64x128xi1>, vector<64x128xi32>
    %74 = arith.addi %68, %73 : vector<64x128xi32>
    %c0_34 = arith.constant 0 : index
    %c0_35 = arith.constant 0 : index
    %75 = vector.load %arg12[%c0_34, %c0_35] : memref<256x128xi32, #tpu.memory_space<vmem>>, vector<64x128xi32>
    tpu.vector_store %arg12[%c0_34, %c0_35], %74 {strides = array<i32>} : memref<256x128xi32, #tpu.memory_space<vmem>>, vector<64x128xi32>,
    %76 = vector.extract_strided_slice %34 {offsets = [64, 0], sizes = [64, 128], strides = [1, 1]} : vector<256x128xbf16> to vector<64x128xbf16>
    %c0_36 = arith.constant 0 : index
    %c0_37 = arith.constant 0 : index
    %77 = vector.load %arg10[%c0_36, %c0_37] : memref<128x128xbf16, #tpu.memory_space<vmem>>, vector<128x128xbf16>
    %cst_38 = arith.constant dense<0.000000e+00> : vector<64x128xf32>
    %78 = tpu.matmul %76, %77, %cst_38 {dimension_numbers = #tpu.dot_dimension_numbers<[1], [0], [0], [1], [0, 0, 1, 1], [], []>} : vector<64x128xbf16>, vector<128x128xbf16>, vector<64x128xf32> -> vector<64x128xf32>
    %c0_39 = arith.constant 0 : index
    %c0_40 = arith.constant 0 : index
    %79 = vector.load %arg11[%c0_39, %c0_40] : memref<1x128xf32, #tpu.memory_space<vmem>>, vector<1x128xf32>
    %80 = vector.broadcast %79 : vector<1x128xf32> to vector<64x128xf32>
    %81 = arith.addf %78, %80 : vector<64x128xf32>
    %82 = vector.broadcast %39 : i32 to vector<64x128xi32>
    %83 = vector.broadcast %35 : f32 to vector<64x128xf32>
    %84 = arith.cmpf ogt, %81, %83 : vector<64x128xf32>
    %c0_i32_41 = arith.constant 0 : i32
    %85 = vector.broadcast %40 : i32 to vector<64x128xi32>
    %86 = vector.broadcast %c0_i32_41 : i32 to vector<64x128xi32>
    %87 = arith.select %84, %85, %86 : vector<64x128xi1>, vector<64x128xi32>
    %88 = arith.addi %82, %87 : vector<64x128xi32>
    %89 = vector.broadcast %36 : f32 to vector<64x128xf32>
    %90 = arith.cmpf ogt, %81, %89 : vector<64x128xf32>
    %c0_i32_42 = arith.constant 0 : i32
    %91 = vector.broadcast %41 : i32 to vector<64x128xi32>
    %92 = vector.broadcast %c0_i32_42 : i32 to vector<64x128xi32>
    %93 = arith.select %90, %91, %92 : vector<64x128xi1>, vector<64x128xi32>
    %94 = arith.addi %88, %93 : vector<64x128xi32>
    %95 = vector.broadcast %37 : f32 to vector<64x128xf32>
    %96 = arith.cmpf ogt, %81, %95 : vector<64x128xf32>
    %c0_i32_43 = arith.constant 0 : i32
    %97 = vector.broadcast %42 : i32 to vector<64x128xi32>
    %98 = vector.broadcast %c0_i32_43 : i32 to vector<64x128xi32>
    %99 = arith.select %96, %97, %98 : vector<64x128xi1>, vector<64x128xi32>
    %100 = arith.addi %94, %99 : vector<64x128xi32>
    %101 = vector.broadcast %38 : f32 to vector<64x128xf32>
    %102 = arith.cmpf ogt, %81, %101 : vector<64x128xf32>
    %c0_i32_44 = arith.constant 0 : i32
    %103 = vector.broadcast %43 : i32 to vector<64x128xi32>
    %104 = vector.broadcast %c0_i32_44 : i32 to vector<64x128xi32>
    %105 = arith.select %102, %103, %104 : vector<64x128xi1>, vector<64x128xi32>
    %106 = arith.addi %100, %105 : vector<64x128xi32>
    %c64 = arith.constant 64 : index
    %c0_45 = arith.constant 0 : index
    %107 = vector.load %arg12[%c64, %c0_45] : memref<256x128xi32, #tpu.memory_space<vmem>>, vector<64x128xi32>
    tpu.vector_store %arg12[%c64, %c0_45], %106 {strides = array<i32>} : memref<256x128xi32, #tpu.memory_space<vmem>>, vector<64x128xi32>,
    %108 = vector.extract_strided_slice %34 {offsets = [128, 0], sizes = [64, 128], strides = [1, 1]} : vector<256x128xbf16> to vector<64x128xbf16>
    %c0_46 = arith.constant 0 : index
    %c0_47 = arith.constant 0 : index
    %109 = vector.load %arg10[%c0_46, %c0_47] : memref<128x128xbf16, #tpu.memory_space<vmem>>, vector<128x128xbf16>
    %cst_48 = arith.constant dense<0.000000e+00> : vector<64x128xf32>
    %110 = tpu.matmul %108, %109, %cst_48 {dimension_numbers = #tpu.dot_dimension_numbers<[1], [0], [0], [1], [0, 0, 1, 1], [], []>} : vector<64x128xbf16>, vector<128x128xbf16>, vector<64x128xf32> -> vector<64x128xf32>
    %c0_49 = arith.constant 0 : index
    %c0_50 = arith.constant 0 : index
    %111 = vector.load %arg11[%c0_49, %c0_50] : memref<1x128xf32, #tpu.memory_space<vmem>>, vector<1x128xf32>
    %112 = vector.broadcast %111 : vector<1x128xf32> to vector<64x128xf32>
    %113 = arith.addf %110, %112 : vector<64x128xf32>
    %114 = vector.broadcast %39 : i32 to vector<64x128xi32>
    %115 = vector.broadcast %35 : f32 to vector<64x128xf32>
    %116 = arith.cmpf ogt, %113, %115 : vector<64x128xf32>
    %c0_i32_51 = arith.constant 0 : i32
    %117 = vector.broadcast %40 : i32 to vector<64x128xi32>
    %118 = vector.broadcast %c0_i32_51 : i32 to vector<64x128xi32>
    %119 = arith.select %116, %117, %118 : vector<64x128xi1>, vector<64x128xi32>
    %120 = arith.addi %114, %119 : vector<64x128xi32>
    %121 = vector.broadcast %36 : f32 to vector<64x128xf32>
    %122 = arith.cmpf ogt, %113, %121 : vector<64x128xf32>
    %c0_i32_52 = arith.constant 0 : i32
    %123 = vector.broadcast %41 : i32 to vector<64x128xi32>
    %124 = vector.broadcast %c0_i32_52 : i32 to vector<64x128xi32>
    %125 = arith.select %122, %123, %124 : vector<64x128xi1>, vector<64x128xi32>
    %126 = arith.addi %120, %125 : vector<64x128xi32>
    %127 = vector.broadcast %37 : f32 to vector<64x128xf32>
    %128 = arith.cmpf ogt, %113, %127 : vector<64x128xf32>
    %c0_i32_53 = arith.constant 0 : i32
    %129 = vector.broadcast %42 : i32 to vector<64x128xi32>
    %130 = vector.broadcast %c0_i32_53 : i32 to vector<64x128xi32>
    %131 = arith.select %128, %129, %130 : vector<64x128xi1>, vector<64x128xi32>
    %132 = arith.addi %126, %131 : vector<64x128xi32>
    %133 = vector.broadcast %38 : f32 to vector<64x128xf32>
    %134 = arith.cmpf ogt, %113, %133 : vector<64x128xf32>
    %c0_i32_54 = arith.constant 0 : i32
    %135 = vector.broadcast %43 : i32 to vector<64x128xi32>
    %136 = vector.broadcast %c0_i32_54 : i32 to vector<64x128xi32>
    %137 = arith.select %134, %135, %136 : vector<64x128xi1>, vector<64x128xi32>
    %138 = arith.addi %132, %137 : vector<64x128xi32>
    %c128 = arith.constant 128 : index
    %c0_55 = arith.constant 0 : index
    %139 = vector.load %arg12[%c128, %c0_55] : memref<256x128xi32, #tpu.memory_space<vmem>>, vector<64x128xi32>
    tpu.vector_store %arg12[%c128, %c0_55], %138 {strides = array<i32>} : memref<256x128xi32, #tpu.memory_space<vmem>>, vector<64x128xi32>,
    %140 = vector.extract_strided_slice %34 {offsets = [192, 0], sizes = [64, 128], strides = [1, 1]} : vector<256x128xbf16> to vector<64x128xbf16>
    %c0_56 = arith.constant 0 : index
    %c0_57 = arith.constant 0 : index
    %141 = vector.load %arg10[%c0_56, %c0_57] : memref<128x128xbf16, #tpu.memory_space<vmem>>, vector<128x128xbf16>
    %cst_58 = arith.constant dense<0.000000e+00> : vector<64x128xf32>
    %142 = tpu.matmul %140, %141, %cst_58 {dimension_numbers = #tpu.dot_dimension_numbers<[1], [0], [0], [1], [0, 0, 1, 1], [], []>} : vector<64x128xbf16>, vector<128x128xbf16>, vector<64x128xf32> -> vector<64x128xf32>
    %c0_59 = arith.constant 0 : index
    %c0_60 = arith.constant 0 : index
    %143 = vector.load %arg11[%c0_59, %c0_60] : memref<1x128xf32, #tpu.memory_space<vmem>>, vector<1x128xf32>
    %144 = vector.broadcast %143 : vector<1x128xf32> to vector<64x128xf32>
    %145 = arith.addf %142, %144 : vector<64x128xf32>
    %146 = vector.broadcast %39 : i32 to vector<64x128xi32>
    %147 = vector.broadcast %35 : f32 to vector<64x128xf32>
    %148 = arith.cmpf ogt, %145, %147 : vector<64x128xf32>
    %c0_i32_61 = arith.constant 0 : i32
    %149 = vector.broadcast %40 : i32 to vector<64x128xi32>
    %150 = vector.broadcast %c0_i32_61 : i32 to vector<64x128xi32>
    %151 = arith.select %148, %149, %150 : vector<64x128xi1>, vector<64x128xi32>
    %152 = arith.addi %146, %151 : vector<64x128xi32>
    %153 = vector.broadcast %36 : f32 to vector<64x128xf32>
    %154 = arith.cmpf ogt, %145, %153 : vector<64x128xf32>
    %c0_i32_62 = arith.constant 0 : i32
    %155 = vector.broadcast %41 : i32 to vector<64x128xi32>
    %156 = vector.broadcast %c0_i32_62 : i32 to vector<64x128xi32>
    %157 = arith.select %154, %155, %156 : vector<64x128xi1>, vector<64x128xi32>
    %158 = arith.addi %152, %157 : vector<64x128xi32>
    %159 = vector.broadcast %37 : f32 to vector<64x128xf32>
    %160 = arith.cmpf ogt, %145, %159 : vector<64x128xf32>
    %c0_i32_63 = arith.constant 0 : i32
    %161 = vector.broadcast %42 : i32 to vector<64x128xi32>
    %162 = vector.broadcast %c0_i32_63 : i32 to vector<64x128xi32>
    %163 = arith.select %160, %161, %162 : vector<64x128xi1>, vector<64x128xi32>
    %164 = arith.addi %158, %163 : vector<64x128xi32>
    %165 = vector.broadcast %38 : f32 to vector<64x128xf32>
    %166 = arith.cmpf ogt, %145, %165 : vector<64x128xf32>
    %c0_i32_64 = arith.constant 0 : i32
    %167 = vector.broadcast %43 : i32 to vector<64x128xi32>
    %168 = vector.broadcast %c0_i32_64 : i32 to vector<64x128xi32>
    %169 = arith.select %166, %167, %168 : vector<64x128xi1>, vector<64x128xi32>
    %170 = arith.addi %164, %169 : vector<64x128xi32>
    %c192 = arith.constant 192 : index
    %c0_65 = arith.constant 0 : index
    %171 = vector.load %arg12[%c192, %c0_65] : memref<256x128xi32, #tpu.memory_space<vmem>>, vector<64x128xi32>
    tpu.vector_store %arg12[%c192, %c0_65], %170 {strides = array<i32>} : memref<256x128xi32, #tpu.memory_space<vmem>>, vector<64x128xi32>,
    return
  }
  func.func @transform_0(%arg0: i32) -> i32 {
    %c0_i32 = arith.constant 0 : i32
    %c0_i32_0 = arith.constant 0 : i32
    return %c0_i32 : i32
  }
  func.func @transform_1(%arg0: i32) -> i32 {
    %c0_i32 = arith.constant 0 : i32
    %c0_i32_0 = arith.constant 0 : i32
    return %c0_i32 : i32
  }
  func.func @transform_2(%arg0: i32) -> (i32, i32) {
    %c0_i32 = arith.constant 0 : i32
    %c0_i32_0 = arith.constant 0 : i32
    return %arg0, %c0_i32 : i32, i32
  }
  func.func @transform_3(%arg0: i32) -> (i32, i32) {
    %c0_i32 = arith.constant 0 : i32
    %c0_i32_0 = arith.constant 0 : i32
    %c0_i32_1 = arith.constant 0 : i32
    return %c0_i32, %c0_i32_0 : i32, i32
  }
  func.func @transform_4(%arg0: i32) -> (i32, i32) {
    %c0_i32 = arith.constant 0 : i32
    %c0_i32_0 = arith.constant 0 : i32
    %c0_i32_1 = arith.constant 0 : i32
    return %c0_i32, %c0_i32_0 : i32, i32
  }
  func.func @transform_5(%arg0: i32) -> (i32, i32) {
    %c0_i32 = arith.constant 0 : i32
    %c0_i32_0 = arith.constant 0 : i32
    %c0_i32_1 = arith.constant 0 : i32
    return %c0_i32, %c0_i32_0 : i32, i32
  }
  func.func @transform_6(%arg0: i32) -> (i32, i32) {
    %c0_i32 = arith.constant 0 : i32
    %c0_i32_0 = arith.constant 0 : i32
    %c0_i32_1 = arith.constant 0 : i32
    return %c0_i32, %c0_i32_0 : i32, i32
  }
  func.func @transform_7(%arg0: i32) -> (i32, i32) {
    %c0_i32 = arith.constant 0 : i32
    %c0_i32_0 = arith.constant 0 : i32
    %c0_i32_1 = arith.constant 0 : i32
    return %c0_i32, %c0_i32_0 : i32, i32
  }
  func.func @transform_8(%arg0: i32) -> (i32, i32) {
    %c0_i32 = arith.constant 0 : i32
    %c0_i32_0 = arith.constant 0 : i32
    %c0_i32_1 = arith.constant 0 : i32
    return %c0_i32, %c0_i32_0 : i32, i32
  }
  func.func @transform_9(%arg0: i32) -> (i32, i32) {
    %c0_i32 = arith.constant 0 : i32
    %c0_i32_0 = arith.constant 0 : i32
    %c0_i32_1 = arith.constant 0 : i32
    return %c0_i32, %c0_i32_0 : i32, i32
  }
  func.func @transform_10(%arg0: i32) -> (i32, i32) {
    %c0_i32 = arith.constant 0 : i32
    %c0_i32_0 = arith.constant 0 : i32
    %c0_i32_1 = arith.constant 0 : i32
    return %c0_i32, %c0_i32_0 : i32, i32
  }
  func.func @transform_11(%arg0: i32) -> (i32, i32) {
    %c0_i32 = arith.constant 0 : i32
    %c0_i32_0 = arith.constant 0 : i32
    return %arg0, %c0_i32 : i32, i32
  }
}

</mosaic_0001>

<llo_original>
// kernel: generator_forward.1
$region0: #{generator_forward.1}
  #allocation0 [shape = 'u32[]', space=smem, size = 0x4, offset = 0x4, fixed_abs, tag = 'smem constant byte address 0x4 - core index']
  #allocation1 [shape = 'u32[144,128]{1,0:T(1,128)}', space=vmem, size = 0x12000, scoped, tag = 'internal scratch']
  %s0 = inlined_call_operand.vmem [shape: f32[5], index: 0, kind: input, shape index: {}]
  %s1 = inlined_call_operand.vmem [shape: s32[5], index: 1, kind: input, shape index: {}]
  %s2 = inlined_call_operand.hbm [shape: f32[1024,128], index: 2, kind: input, shape index: {}]
  %s3 = inlined_call_operand.vmem [shape: bf16[128,128], index: 3, kind: input, shape index: {}]
  %s4 = inlined_call_operand.vmem [shape: f32[1,128], index: 4, kind: input, shape index: {}]
  %s5 = inlined_call_operand.vmem [shape: bf16[128,128], index: 5, kind: input, shape index: {}]
  %s6 = inlined_call_operand.vmem [shape: f32[1,128], index: 6, kind: input, shape index: {}]
  %s7 = inlined_call_operand.vmem [shape: bf16[128,128], index: 7, kind: input, shape index: {}]
  %s8 = inlined_call_operand.vmem [shape: f32[1,128], index: 8, kind: input, shape index: {}]
  %s9 = inlined_call_operand.vmem [shape: bf16[128,128], index: 9, kind: input, shape index: {}]
  %s10 = inlined_call_operand.vmem [shape: f32[1,128], index: 10, kind: input, shape index: {}]
  %s11 = inlined_call_operand.hbm [shape: s32[1024,128], index: 11, kind: output, shape index: {}]
  %s12 = sld [smem:[#allocation0]]
  $region89: #{generator_forward.1} parent=0
    _
  %s14 = ssub.s32 1, %s12
  %s15 = scalar_select 0, %s14, %s12
  $region1: #{generator_forward.1} parent=0
    #allocation2 [shape = 'u8[512]{0}', space=smem, size = 0x200, scoped, tag = 'input window, operand 0, single buffered']
    #allocation3 [shape = 's32[2]{0}', space=sflag, size = 0x8, scoped, tag = 'scoped memory for generator_forward.1']
    #allocation4 [shape = 's32[2]{0}', space=sflag, size = 0x8, scoped, tag = 'scoped memory for generator_forward.1']
    #allocation5 [shape = 's32[2]{0}', space=sflag, size = 0x8, scoped, tag = 'scoped memory for generator_forward.1']
    #allocation6 [shape = 'u8[512]{0}', space=smem, size = 0x200, scoped, tag = 'input window, operand 1, single buffered']
    #allocation7 [shape = 's32[1]{0}', space=sflag, size = 0x4, scoped, tag = 'scoped memory for generator_forward.1']
    #allocation8 [shape = 'u8[262144]{0}', space=vmem, size = 0x40000, scoped, tag = 'input window, operand 2']
    #allocation9 [shape = 'u8[262144]{0}', space=vmem, size = 0x40000, scoped, tag = 'output window, operand 0']
    %16 = vsyncpa [#allocation5], 0
    %17 = vsyncpa [#allocation7], 0
    %18 = vsyncpa [#allocation3], 0
    %s19 = scalar_lea.sflag [#allocation3], 1
    %20 = vsyncpa %s19, 0
    %21 = vsyncpa [#allocation4], 0
    %s22 = scalar_lea.sflag [#allocation4], 1
    %23 = vsyncpa %s22, 0
    loop: start=0, step=1, limit=6
    $region2: #{generator_forward.1} parent=1 // loop_pre_header
      _
    $region3: #{generator_forward.1} parent=1 // loop_header
      %s25 = sphi 0, %s29
      %p26 = scmp.ge.s32.totalorder %s25, 6
      %s33 = sphi 0, %s33
      %s35 = sphi 0, %s33
      %s36 = sphi 0, %s35
      %s50 = sphi 0, %s36
      %s54 = sphi 0, %s54
      %s56 = sphi 0, %s54
      %s57 = sphi 0, %s56
      %s71 = sphi 0, %s57
      %s77 = sphi 0, %s79
      %s80 = sphi 0, %s77
      %s81 = sphi 0, %s80
      %s97 = sphi 0, %s81
      %s101 = sphi 0, %s101
      %s103 = sphi 0, %s101
      %s104 = sphi 0, %s103
      %s118 = sphi 0, %s104
      %s122 = sphi 0, %s122
      %s124 = sphi 0, %s122
      %s125 = sphi 0, %s124
      %s139 = sphi 0, %s125
      %s143 = sphi 0, %s143
      %s145 = sphi 0, %s143
      %s146 = sphi 0, %s145
      %s160 = sphi 0, %s146
      %s164 = sphi 0, %s164
      %s166 = sphi 0, %s164
      %s167 = sphi 0, %s166
      %s181 = sphi 0, %s167
      %s185 = sphi 0, %s185
      %s187 = sphi 0, %s185
      %s188 = sphi 0, %s187
      %s202 = sphi 0, %s188
      %s206 = sphi 0, %s206
      %s208 = sphi 0, %s206
      %s209 = sphi 0, %s208
      %s223 = sphi 0, %s209
      %s227 = sphi 0, %s227
      %s229 = sphi 0, %s227
      %s230 = sphi 0, %s229
      %s244 = sphi 0, %s230
      %s248 = sphi 0, %s248
      %s250 = sphi 0, %s248
      %s251 = sphi 0, %s250
      %s265 = sphi 0, %s251
      %s271 = sphi 0, %s273
      %s274 = sphi 0, %s271
      %s275 = sphi 0, %s274
      %s291 = sphi 0, %s275
    $region4: #{generator_forward.1} parent=1 // loop_header_branch
      %28 = sbr.rel (%p26) target = $region8
    $region5: #{generator_forward.1} parent=1 // loop_body
      %s30 = ssub.s32 %s25, 1
      %s31 = ssub.s32 %s25, 2
      %s32 = sadd.s32 %s25, 1
      %s34 = sadd.s32 %s33, 1
      %p37 = scmp.eq.s32.totalorder %s25, 3
      %p38 = scmp.ne.s32.totalorder %s33, %s35
      %p39 = scmp.eq.s32.totalorder %s25, 0
      %p40 = por %p38, %p39
      %p41 = scmp.ne.s32.totalorder %s33, %s35
      %p42 = scmp.eq.s32.totalorder %s30, 3
      %p43 = por %p41, %p42
      %p44 = scmp.ne.s32.totalorder %s35, %s36
      %p45 = scmp.eq.s32.totalorder %s30, 0
      %p46 = por %p44, %p45
      %p47 = scmp.ne.s32.totalorder %s35, %s36
      %p48 = scmp.eq.s32.totalorder %s31, 3
      %p49 = por %p47, %p48
      %p51 = scmp.ne.s32.totalorder %s36, %s50
      %p52 = scmp.eq.s32.totalorder %s31, 0
      %p53 = por %p51, %p52
      %s55 = sadd.s32 %s54, 1
      %p58 = scmp.eq.s32.totalorder %s25, 3
      %p59 = scmp.ne.s32.totalorder %s54, %s56
      %p60 = scmp.eq.s32.totalorder %s25, 0
      %p61 = por %p59, %p60
      %p62 = scmp.ne.s32.totalorder %s54, %s56
      %p63 = scmp.eq.s32.totalorder %s30, 3
      %p64 = por %p62, %p63
      %p65 = scmp.ne.s32.totalorder %s56, %s57
      %p66 = scmp.eq.s32.totalorder %s30, 0
      %p67 = por %p65, %p66
      %p68 = scmp.ne.s32.totalorder %s56, %s57
      %p69 = scmp.eq.s32.totalorder %s31, 3
      %p70 = por %p68, %p69
      %p72 = scmp.ne.s32.totalorder %s57, %s71
      %p73 = scmp.eq.s32.totalorder %s31, 0
      %p74 = por %p72, %p73
      %s75 = ssub.s32 %s25, %s32
      %p76 = scmp.eq.s32.totalorder %s75, 0
      %s78 = sadd.s32 %s77, 1
      %s79 = scalar_select %p76, %s77, %s78
      %p82 = pneg %p76
      %p83 = scmp.eq.s32.totalorder %s25, 3
      %p84 = por %p82, %p83
      %p85 = scmp.ne.s32.totalorder %s77, %s80
      %p86 = scmp.eq.s32.totalorder %s25, 0
      %p87 = por %p85, %p86
      %p88 = scmp.ne.s32.totalorder %s77, %s80
      %p89 = scmp.eq.s32.totalorder %s30, 3
      %p90 = por %p88, %p89
      %p91 = scmp.ne.s32.totalorder %s80, %s81
      %p92 = scmp.eq.s32.totalorder %s30, 0
      %p93 = por %p91, %p92
      %p94 = scmp.ne.s32.totalorder %s80, %s81
      %p95 = scmp.eq.s32.totalorder %s31, 3
      %p96 = por %p94, %p95
      %p98 = scmp.ne.s32.totalorder %s81, %s97
      %p99 = scmp.eq.s32.totalorder %s31, 0
      %p100 = por %p98, %p99
      %s102 = sadd.s32 %s101, 1
      %p105 = scmp.eq.s32.totalorder %s25, 3
      %p106 = scmp.ne.s32.totalorder %s101, %s103
      %p107 = scmp.eq.s32.totalorder %s25, 0
      %p108 = por %p106, %p107
      %p109 = scmp.ne.s32.totalorder %s101, %s103
      %p110 = scmp.eq.s32.totalorder %s30, 3
      %p111 = por %p109, %p110
      %p112 = scmp.ne.s32.totalorder %s103, %s104
      %p113 = scmp.eq.s32.totalorder %s30, 0
      %p114 = por %p112, %p113
      %p115 = scmp.ne.s32.totalorder %s103, %s104
      %p116 = scmp.eq.s32.totalorder %s31, 3
      %p117 = por %p115, %p116
      %p119 = scmp.ne.s32.totalorder %s104, %s118
      %p120 = scmp.eq.s32.totalorder %s31, 0
      %p121 = por %p119, %p120
      %s123 = sadd.s32 %s122, 1
      %p126 = scmp.eq.s32.totalorder %s25, 3
      %p127 = scmp.ne.s32.totalorder %s122, %s124
      %p128 = scmp.eq.s32.totalorder %s25, 0
      %p129 = por %p127, %p128
      %p130 = scmp.ne.s32.totalorder %s122, %s124
      %p131 = scmp.eq.s32.totalorder %s30, 3
      %p132 = por %p130, %p131
      %p133 = scmp.ne.s32.totalorder %s124, %s125
      %p134 = scmp.eq.s32.totalorder %s30, 0
      %p135 = por %p133, %p134
      %p136 = scmp.ne.s32.totalorder %s124, %s125
      %p137 = scmp.eq.s32.totalorder %s31, 3
      %p138 = por %p136, %p137
      %p140 = scmp.ne.s32.totalorder %s125, %s139
      %p141 = scmp.eq.s32.totalorder %s31, 0
      %p142 = por %p140, %p141
      %s144 = sadd.s32 %s143, 1
      %p147 = scmp.eq.s32.totalorder %s25, 3
      %p148 = scmp.ne.s32.totalorder %s143, %s145
      %p149 = scmp.eq.s32.totalorder %s25, 0
      %p150 = por %p148, %p149
      %p151 = scmp.ne.s32.totalorder %s143, %s145
      %p152 = scmp.eq.s32.totalorder %s30, 3
      %p153 = por %p151, %p152
      %p154 = scmp.ne.s32.totalorder %s145, %s146
      %p155 = scmp.eq.s32.totalorder %s30, 0
      %p156 = por %p154, %p155
      %p157 = scmp.ne.s32.totalorder %s145, %s146
      %p158 = scmp.eq.s32.totalorder %s31, 3
      %p159 = por %p157, %p158
      %p161 = scmp.ne.s32.totalorder %s146, %s160
      %p162 = scmp.eq.s32.totalorder %s31, 0
      %p163 = por %p161, %p162
      %s165 = sadd.s32 %s164, 1
      %p168 = scmp.eq.s32.totalorder %s25, 3
      %p169 = scmp.ne.s32.totalorder %s164, %s166
      %p170 = scmp.eq.s32.totalorder %s25, 0
      %p171 = por %p169, %p170
      %p172 = scmp.ne.s32.totalorder %s164, %s166
      %p173 = scmp.eq.s32.totalorder %s30, 3
      %p174 = por %p172, %p173
      %p175 = scmp.ne.s32.totalorder %s166, %s167
      %p176 = scmp.eq.s32.totalorder %s30, 0
      %p177 = por %p175, %p176
      %p178 = scmp.ne.s32.totalorder %s166, %s167
      %p179 = scmp.eq.s32.totalorder %s31, 3
      %p180 = por %p178, %p179
      %p182 = scmp.ne.s32.totalorder %s167, %s181
      %p183 = scmp.eq.s32.totalorder %s31, 0
      %p184 = por %p182, %p183
      %s186 = sadd.s32 %s185, 1
      %p189 = scmp.eq.s32.totalorder %s25, 3
      %p190 = scmp.ne.s32.totalorder %s185, %s187
      %p191 = scmp.eq.s32.totalorder %s25, 0
      %p192 = por %p190, %p191
      %p193 = scmp.ne.s32.totalorder %s185, %s187
      %p194 = scmp.eq.s32.totalorder %s30, 3
      %p195 = por %p193, %p194
      %p196 = scmp.ne.s32.totalorder %s187, %s188
      %p197 = scmp.eq.s32.totalorder %s30, 0
      %p198 = por %p196, %p197
      %p199 = scmp.ne.s32.totalorder %s187, %s188
      %p200 = scmp.eq.s32.totalorder %s31, 3
      %p201 = por %p199, %p200
      %p203 = scmp.ne.s32.totalorder %s188, %s202
      %p204 = scmp.eq.s32.totalorder %s31, 0
      %p205 = por %p203, %p204
      %s207 = sadd.s32 %s206, 1
      %p210 = scmp.eq.s32.totalorder %s25, 3
      %p211 = scmp.ne.s32.totalorder %s206, %s208
      %p212 = scmp.eq.s32.totalorder %s25, 0
      %p213 = por %p211, %p212
      %p214 = scmp.ne.s32.totalorder %s206, %s208
      %p215 = scmp.eq.s32.totalorder %s30, 3
      %p216 = por %p214, %p215
      %p217 = scmp.ne.s32.totalorder %s208, %s209
      %p218 = scmp.eq.s32.totalorder %s30, 0
      %p219 = por %p217, %p218
      %p220 = scmp.ne.s32.totalorder %s208, %s209
      %p221 = scmp.eq.s32.totalorder %s31, 3
      %p222 = por %p220, %p221
      %p224 = scmp.ne.s32.totalorder %s209, %s223
      %p225 = scmp.eq.s32.totalorder %s31, 0
      %p226 = por %p224, %p225
      %s228 = sadd.s32 %s227, 1
      %p231 = scmp.eq.s32.totalorder %s25, 3
      %p232 = scmp.ne.s32.totalorder %s227, %s229
      %p233 = scmp.eq.s32.totalorder %s25, 0
      %p234 = por %p232, %p233
      %p235 = scmp.ne.s32.totalorder %s227, %s229
      %p236 = scmp.eq.s32.totalorder %s30, 3
      %p237 = por %p235, %p236
      %p238 = scmp.ne.s32.totalorder %s229, %s230
      %p239 = scmp.eq.s32.totalorder %s30, 0
      %p240 = por %p238, %p239
      %p241 = scmp.ne.s32.totalorder %s229, %s230
      %p242 = scmp.eq.s32.totalorder %s31, 3
      %p243 = por %p241, %p242
      %p245 = scmp.ne.s32.totalorder %s230, %s244
      %p246 = scmp.eq.s32.totalorder %s31, 0
      %p247 = por %p245, %p246
      %s249 = sadd.s32 %s248, 1
      %p252 = scmp.eq.s32.totalorder %s25, 3
      %p253 = scmp.ne.s32.totalorder %s248, %s250
      %p254 = scmp.eq.s32.totalorder %s25, 0
      %p255 = por %p253, %p254
      %p256 = scmp.ne.s32.totalorder %s248, %s250
      %p257 = scmp.eq.s32.totalorder %s30, 3
      %p258 = por %p256, %p257
      %p259 = scmp.ne.s32.totalorder %s250, %s251
      %p260 = scmp.eq.s32.totalorder %s30, 0
      %p261 = por %p259, %p260
      %p262 = scmp.ne.s32.totalorder %s250, %s251
      %p263 = scmp.eq.s32.totalorder %s31, 3
      %p264 = por %p262, %p263
      %p266 = scmp.ne.s32.totalorder %s251, %s265
      %p267 = scmp.eq.s32.totalorder %s31, 0
      %p268 = por %p266, %p267
      %s269 = ssub.s32 %s25, %s32
      %p270 = scmp.eq.s32.totalorder %s269, 0
      %s272 = sadd.s32 %s271, 1
      %s273 = scalar_select %p270, %s271, %s272
      %p276 = pneg %p270
      %p277 = scmp.eq.s32.totalorder %s25, 3
      %p278 = por %p276, %p277
      %p279 = scmp.ne.s32.totalorder %s271, %s274
      %p280 = scmp.eq.s32.totalorder %s25, 0
      %p281 = por %p279, %p280
      %p282 = scmp.ne.s32.totalorder %s271, %s274
      %p283 = scmp.eq.s32.totalorder %s30, 3
      %p284 = por %p282, %p283
      %p285 = scmp.ne.s32.totalorder %s274, %s275
      %p286 = scmp.eq.s32.totalorder %s30, 0
      %p287 = por %p285, %p286
      %p288 = scmp.ne.s32.totalorder %s274, %s275
      %p289 = scmp.eq.s32.totalorder %s31, 3
      %p290 = por %p288, %p289
      %p292 = scmp.ne.s32.totalorder %s275, %s291
      %p293 = scmp.eq.s32.totalorder %s31, 0
      %p294 = por %p292, %p293
      %p295 = scmp.le.s32.totalorder 1, %s25
      %p296 = scmp.lt.s32.totalorder %s25, 5
      %p297 = pnand %p295, %p296
      %p298 = pneg %p297
      // Predicated region
      $region9: #{generator_forward.1} parent=5 // pred_check
        _
      $region10: #{generator_forward.1} parent=5 // pred_check_branch
        %300 = sbr.rel (%p297) target = $region12
      $region11: #{generator_forward.1} parent=5 // pred_region
        %s301 = ssub.s32 %s25, 1
        // Predicated region
        $region13: #{generator_forward.1} parent=11 // pred_check
          %p302 = pneg %p46
        $region14: #{generator_forward.1} parent=11 // pred_check_branch
          %304 = sbr.rel (%p302) target = $region16
        $region15: #{generator_forward.1} parent=11 // pred_region
          %s306 = ssub.s32 16, 16
          %307 = vsyncadd [#allocation5], %s306
          %s309 = sshll.u32 %s0, 4
          %s310 = int_to_ptr.vmem [resolvable:$true] %s309
          %312 = dma.vmem_to_smem %s310, 16, [#allocation2], [#allocation5]
        $region16: #{generator_forward.1} parent=11 // pred_fallthru
          _
        // Predicated region
        $region17: #{generator_forward.1} parent=11 // pred_check
          %p313 = pneg %p67
        $region18: #{generator_forward.1} parent=11 // pred_check_branch
          %315 = sbr.rel (%p313) target = $region20
        $region19: #{generator_forward.1} parent=11 // pred_region
          %s317 = ssub.s32 16, 16
          %318 = vsyncadd [#allocation7], %s317
          %s320 = sshll.u32 %s1, 4
          %s321 = int_to_ptr.vmem [resolvable:$true] %s320
          %323 = dma.vmem_to_smem %s321, 16, [#allocation6], [#allocation7]
        $region20: #{generator_forward.1} parent=11 // pred_fallthru
          _
        // Predicated region
        $region21: #{generator_forward.1} parent=11 // pred_check
          %p324 = pneg %p114
        $region22: #{generator_forward.1} parent=11 // pred_check_branch
          %326 = sbr.rel (%p324) target = $region24
        $region23: #{generator_forward.1} parent=11 // pred_region
          _
        $region24: #{generator_forward.1} parent=11 // pred_fallthru
          _
        // Predicated region
        $region25: #{generator_forward.1} parent=11 // pred_check
          %p327 = pneg %p135
        $region26: #{generator_forward.1} parent=11 // pred_check_branch
          %329 = sbr.rel (%p327) target = $region28
        $region27: #{generator_forward.1} parent=11 // pred_region
          _
        $region28: #{generator_forward.1} parent=11 // pred_fallthru
          _
        // Predicated region
        $region29: #{generator_forward.1} parent=11 // pred_check
          %p330 = pneg %p156
        $region30: #{generator_forward.1} parent=11 // pred_check_branch
          %332 = sbr.rel (%p330) target = $region32
        $region31: #{generator_forward.1} parent=11 // pred_region
          _
        $region32: #{generator_forward.1} parent=11 // pred_fallthru
          _
        // Predicated region
        $region33: #{generator_forward.1} parent=11 // pred_check
          %p333 = pneg %p177
        $region34: #{generator_forward.1} parent=11 // pred_check_branch
          %335 = sbr.rel (%p333) target = $region36
        $region35: #{generator_forward.1} parent=11 // pred_region
          _
        $region36: #{generator_forward.1} parent=11 // pred_fallthru
          _
        // Predicated region
        $region37: #{generator_forward.1} parent=11 // pred_check
          %p336 = pneg %p198
        $region38: #{generator_forward.1} parent=11 // pred_check_branch
          %338 = sbr.rel (%p336) target = $region40
        $region39: #{generator_forward.1} parent=11 // pred_region
          _
        $region40: #{generator_forward.1} parent=11 // pred_fallthru
          _
        // Predicated region
        $region41: #{generator_forward.1} parent=11 // pred_check
          %p339 = pneg %p219
        $region42: #{generator_forward.1} parent=11 // pred_check_branch
          %341 = sbr.rel (%p339) target = $region44
        $region43: #{generator_forward.1} parent=11 // pred_region
          _
        $region44: #{generator_forward.1} parent=11 // pred_fallthru
          _
        // Predicated region
        $region45: #{generator_forward.1} parent=11 // pred_check
          %p342 = pneg %p240
        $region46: #{generator_forward.1} parent=11 // pred_check_branch
          %344 = sbr.rel (%p342) target = $region48
        $region47: #{generator_forward.1} parent=11 // pred_region
          _
        $region48: #{generator_forward.1} parent=11 // pred_fallthru
          _
        // Predicated region
        $region49: #{generator_forward.1} parent=11 // pred_check
          %p345 = pneg %p261
        $region50: #{generator_forward.1} parent=11 // pred_check_branch
          %347 = sbr.rel (%p345) target = $region52
        $region51: #{generator_forward.1} parent=11 // pred_region
          _
        $region52: #{generator_forward.1} parent=11 // pred_fallthru
          _
      $region12: #{generator_forward.1} parent=5 // pred_fallthru
        _
      %p348 = scmp.lt.s32.totalorder %s25, 4
      // Predicated region
      $region53: #{generator_forward.1} parent=5 // pred_check
        %p349 = pneg %p348
      $region54: #{generator_forward.1} parent=5 // pred_check_branch
        %351 = sbr.rel (%p349) target = $region56
      $region55: #{generator_forward.1} parent=5 // pred_region
        // Predicated region
        $region57: #{generator_forward.1} parent=55 // pred_check
          %p352 = pneg %p87
        $region58: #{generator_forward.1} parent=55 // pred_check_branch
          %354 = sbr.rel (%p352) target = $region60
        $region59: #{generator_forward.1} parent=55 // pred_region
          %s355 = sand.u32 %s77, 1
          %s356 = scalar_lea.sflag [#allocation3], %s355
          %s357 = sand.u32 %s77, 1
          %s358 = smul.addr %s357, 256
          %s359 = scalar_lea.vmem [#allocation8], %s358
          %s360 = smul.u32 32, %s25
          %s362 = ssub.s32 4096, 4096
          %363 = vsyncadd %s356, %s362
          %s364 = smul.addr %s360, 128
          %s365 = scalar_lea.hbm %s2, %s364
          %s366 = sshll.u32 %s359, 4
          %s367 = int_to_ptr.vmem [resolvable:$true] %s366
          %372 = dma.hbm_to_vmem [thread:$0]  %s365, 4096, %s367, %s356, 128, 128, 8
        $region60: #{generator_forward.1} parent=55 // pred_fallthru
          _
      $region56: #{generator_forward.1} parent=5 // pred_fallthru
        _
      %p373 = scmp.le.s32.totalorder 1, %s25
      %p374 = scmp.lt.s32.totalorder %s25, 5
      %p375 = pnand %p373, %p374
      %p376 = pneg %p375
      // Predicated region
      $region61: #{generator_forward.1} parent=5 // pred_check
        _
      $region62: #{generator_forward.1} parent=5 // pred_check_branch
        %378 = sbr.rel (%p375) target = $region64
      $region63: #{generator_forward.1} parent=5 // pred_region
        %s379 = ssub.s32 %s25, 1
        // Predicated region
        $region65: #{generator_forward.1} parent=63 // pred_check
          %p380 = pneg %p46
        $region66: #{generator_forward.1} parent=63 // pred_check_branch
          %382 = sbr.rel (%p380) target = $region68
        $region67: #{generator_forward.1} parent=63 // pred_region
          %383 = dma.done [#allocation5], 16
        $region68: #{generator_forward.1} parent=63 // pred_fallthru
          _
        // Predicated region
        $region69: #{generator_forward.1} parent=63 // pred_check
          %p384 = pneg %p67
        $region70: #{generator_forward.1} parent=63 // pred_check_branch
          %386 = sbr.rel (%p384) target = $region72
        $region71: #{generator_forward.1} parent=63 // pred_region
          %387 = dma.done [#allocation7], 16
        $region72: #{generator_forward.1} parent=63 // pred_fallthru
          _
        %s388 = sand.u32 %s80, 1
        %s389 = scalar_lea.sflag [#allocation3], %s388
        %s390 = sand.u32 %s80, 1
        %s391 = smul.addr %s390, 256
        %s392 = scalar_lea.vmem [#allocation8], %s391
        // Predicated region
        $region73: #{generator_forward.1} parent=63 // pred_check
          %p393 = pneg %p93
        $region74: #{generator_forward.1} parent=63 // pred_check_branch
          %395 = sbr.rel (%p393) target = $region76
        $region75: #{generator_forward.1} parent=63 // pred_region
          %396 = dma.done %s389, 4096
        $region76: #{generator_forward.1} parent=63 // pred_fallthru
          _
        %397 = sfence
        %p398 = pneg %p46
        %p399 = pneg %p43
        %p400 = pneg %p67
        %p401 = pneg %p64
        %s402 = sand.u32 %s80, 1
        %s403 = scalar_lea.sflag [#allocation3], %s402
        %s404 = sand.u32 %s80, 1
        %s405 = smul.addr %s404, 256
        %s406 = scalar_lea.vmem [#allocation8], %s405
        %p407 = pneg %p93
        %p408 = pneg %p90
        %p409 = pneg %p114
        %p410 = pneg %p111
        %p411 = pneg %p135
        %p412 = pneg %p132
        %p413 = pneg %p156
        %p414 = pneg %p153
        %p415 = pneg %p177
        %p416 = pneg %p174
        %p417 = pneg %p198
        %p418 = pneg %p195
        %p419 = pneg %p219
        %p420 = pneg %p216
        %p421 = pneg %p240
        %p422 = pneg %p237
        %p423 = pneg %p261
        %p424 = pneg %p258
        %p425 = pneg %p287
        %p426 = pneg %p284
        %s427 = sand.u32 %s274, 1
        %s428 = scalar_lea.sflag [#allocation4], %s427
        %s429 = sand.u32 %s274, 1
        %s430 = smul.addr %s429, 256
        %s431 = scalar_lea.vmem [#allocation9], %s430
        %s432 = smul.u32 32, %s30
        %s433 = smul.u32 32, %s30
        %v435 = vld [vmem:[%s392] sm:$0xff]
        %v436 = vld [vmem:[%s392 + $0x8] sm:$0xff]
        %v437 = vld [vmem:[%s392 + $0x10] sm:$0xff]
        %v438 = vld [vmem:[%s392 + $0x18] sm:$0xff]
        %v439 = vld [vmem:[%s392 + $0x20] sm:$0xff]
        %v440 = vld [vmem:[%s392 + $0x28] sm:$0xff]
        %v441 = vld [vmem:[%s392 + $0x30] sm:$0xff]
        %v442 = vld [vmem:[%s392 + $0x38] sm:$0xff]
        %v443 = vld [vmem:[%s392 + $0x40] sm:$0xff]
        %v444 = vld [vmem:[%s392 + $0x48] sm:$0xff]
        %v445 = vld [vmem:[%s392 + $0x50] sm:$0xff]
        %v446 = vld [vmem:[%s392 + $0x58] sm:$0xff]
        %v447 = vld [vmem:[%s392 + $0x60] sm:$0xff]
        %v448 = vld [vmem:[%s392 + $0x68] sm:$0xff]
        %v449 = vld [vmem:[%s392 + $0x70] sm:$0xff]
        %v450 = vld [vmem:[%s392 + $0x78] sm:$0xff]
        %v451 = vld [vmem:[%s392 + $0x80] sm:$0xff]
        %v452 = vld [vmem:[%s392 + $0x88] sm:$0xff]
        %v453 = vld [vmem:[%s392 + $0x90] sm:$0xff]
        %v454 = vld [vmem:[%s392 + $0x98] sm:$0xff]
        %v455 = vld [vmem:[%s392 + $0xa0] sm:$0xff]
        %v456 = vld [vmem:[%s392 + $0xa8] sm:$0xff]
        %v457 = vld [vmem:[%s392 + $0xb0] sm:$0xff]
        %v458 = vld [vmem:[%s392 + $0xb8] sm:$0xff]
        %v459 = vld [vmem:[%s392 + $0xc0] sm:$0xff]
        %v460 = vld [vmem:[%s392 + $0xc8] sm:$0xff]
        %v461 = vld [vmem:[%s392 + $0xd0] sm:$0xff]
        %v462 = vld [vmem:[%s392 + $0xd8] sm:$0xff]
        %v463 = vld [vmem:[%s392 + $0xe0] sm:$0xff]
        %v464 = vld [vmem:[%s392 + $0xe8] sm:$0xff]
        %v465 = vld [vmem:[%s392 + $0xf0] sm:$0xff]
        %v466 = vld [vmem:[%s392 + $0xf8] sm:$0xff]
        %v467 = vpack.c.bf16 %v436, %v435
        %v468 = vpack.c.bf16 %v438, %v437
        %v469 = vpack.c.bf16 %v440, %v439
        %v470 = vpack.c.bf16 %v442, %v441
        %v471 = vpack.c.bf16 %v444, %v443
        %v472 = vpack.c.bf16 %v446, %v445
        %v473 = vpack.c.bf16 %v448, %v447
        %v474 = vpack.c.bf16 %v450, %v449
        %v475 = vpack.c.bf16 %v452, %v451
        %v476 = vpack.c.bf16 %v454, %v453
        %v477 = vpack.c.bf16 %v456, %v455
        %v478 = vpack.c.bf16 %v458, %v457
        %v479 = vpack.c.bf16 %v460, %v459
        %v480 = vpack.c.bf16 %v462, %v461
        %v481 = vpack.c.bf16 %v464, %v463
        %v482 = vpack.c.bf16 %v466, %v465
        %v483 = vld [vmem:[%s3] sm:$0xf]
        %v484 = vld [vmem:[%s3 + $0x4] sm:$0xf]
        %v485 = vld [vmem:[%s3 + $0x8] sm:$0xf]
        %v486 = vld [vmem:[%s3 + $0xc] sm:$0xf]
        %v487 = vld [vmem:[%s3 + $0x10] sm:$0xf]
        %v488 = vld [vmem:[%s3 + $0x14] sm:$0xf]
        %v489 = vld [vmem:[%s3 + $0x18] sm:$0xf]
        %v490 = vld [vmem:[%s3 + $0x1c] sm:$0xf]
        %v491 = vld [vmem:[%s3 + $0x20] sm:$0xf]
        %v492 = vld [vmem:[%s3 + $0x24] sm:$0xf]
        %v493 = vld [vmem:[%s3 + $0x28] sm:$0xf]
        %v494 = vld [vmem:[%s3 + $0x2c] sm:$0xf]
        %v495 = vld [vmem:[%s3 + $0x30] sm:$0xf]
        %v496 = vld [vmem:[%s3 + $0x34] sm:$0xf]
        %v497 = vld [vmem:[%s3 + $0x38] sm:$0xf]
        %v498 = vld [vmem:[%s3 + $0x3c] sm:$0xf]
        %v499 = vld [vmem:[%s4] sm:$0x1]
        %v501 = vlaneseq
        %v502 = vshrl.u32 %v501, 7
        %v503 = vsub.s32 0, %v502
        %v504 = vrot.slane %v499, %v503
        %v522 = vunpack.c.l.b16 %v483
        %v523 = vunpack.c.l.b16 %v484
        %v524 = vunpack.c.l.b16 %v485
        %v525 = vunpack.c.l.b16 %v486
        %v526 = vunpack.c.l.b16 %v487
        %v527 = vunpack.c.l.b16 %v488
        %v528 = vunpack.c.l.b16 %v489
        %v529 = vunpack.c.l.b16 %v490
        %v530 = vunpack.c.l.b16 %v491
        %v531 = vunpack.c.l.b16 %v492
        %v532 = vunpack.c.l.b16 %v493
        %v533 = vunpack.c.l.b16 %v494
        %v534 = vunpack.c.l.b16 %v495
        %v535 = vunpack.c.l.b16 %v496
        %v536 = vunpack.c.l.b16 %v497
        %v537 = vunpack.c.l.b16 %v498
        %v538 = vpack.c.b16 %v523, %v522
        %v539 = vpack.c.b16 %v525, %v524
        %v540 = vpack.c.b16 %v527, %v526
        %v541 = vpack.c.b16 %v529, %v528
        %v542 = vpack.c.b16 %v531, %v530
        %v543 = vpack.c.b16 %v533, %v532
        %v544 = vpack.c.b16 %v535, %v534
        %v545 = vpack.c.b16 %v537, %v536
        %554 = vmatprep.subr.bf16.mxu0 0
        %555 = vmatpush1.bf16.msra.mxu0 %v538
        %556 = vmatprep.subr.bf16.mxu0 0
        %557 = vmatpush1.bf16.msra.mxu0 %v539
        %558 = vmatprep.subr.bf16.mxu0 0
        %559 = vmatpush1.bf16.msra.mxu0 %v540
        %560 = vmatprep.subr.bf16.mxu0 0
        %561 = vmatpush1.bf16.msra.mxu0 %v541
        %562 = vmatprep.subr.bf16.mxu0 0
        %563 = vmatpush1.bf16.msra.mxu0 %v542
        %564 = vmatprep.subr.bf16.mxu0 0
        %565 = vmatpush1.bf16.msra.mxu0 %v543
        %566 = vmatprep.subr.bf16.mxu0 0
        %567 = vmatpush1.bf16.msra.mxu0 %v544
        %568 = vmatprep.subr.bf16.mxu0 0
        %569 = vmatpush1.bf16.msra.mxu0 %v545
        %570 = vmatprep.subr.bf16.mxu0 0
        %571 = vmatpush1.bf16.msra.mxu0 0
        %572 = vmatprep.subr.bf16.mxu0 0
        %573 = vmatpush1.bf16.msra.mxu0 0
        %574 = vmatprep.subr.bf16.mxu0 0
        %575 = vmatpush1.bf16.msra.mxu0 0
        %576 = vmatprep.subr.bf16.mxu0 0
        %577 = vmatpush1.bf16.msra.mxu0 0
        %578 = vmatprep.subr.bf16.mxu0 0
        %579 = vmatpush1.bf16.msra.mxu0 0
        %580 = vmatprep.subr.bf16.mxu0 0
        %581 = vmatpush1.bf16.msra.mxu0 0
        %582 = vmatprep.subr.bf16.mxu0 0
        %583 = vmatpush1.bf16.msra.mxu0 0
        %584 = vmatprep.subr.bf16.mxu0 0
        %585 = vmatpush1.bf16.msra.mxu0 0
        %586 = vmatprep.mubr.bf16.mxu0 0
        %587 = vmatmul.mubr.bf16.gmra.mrb[0].mxu0 %v467
        %v588 = vpop.f32.mrb[0].mxu0
        %v589 = vadd.f32 %v504, %v588
        %v590 = vpop.f32.mrb[0].mxu0
        %v591 = vpop.f32.mrb[0].mxu0
        %v592 = vadd.f32 %v504, %v591
        %v593 = vpop.f32.mrb[0].mxu0
        %594 = vmatprep.mubr.bf16.mxu0 0
        %595 = vmatmul.mubr.bf16.gmra.mrb[0].mxu0 %v468
        %v596 = vpop.f32.mrb[0].mxu0
        %v597 = vadd.f32 %v504, %v596
        %v598 = vpop.f32.mrb[0].mxu0
        %v599 = vpop.f32.mrb[0].mxu0
        %v600 = vadd.f32 %v504, %v599
        %v601 = vpop.f32.mrb[0].mxu0
        %602 = vmatprep.mubr.bf16.mxu0 0
        %603 = vmatmul.mubr.bf16.gmra.mrb[0].mxu0 %v469
        %v604 = vpop.f32.mrb[0].mxu0
        %v605 = vadd.f32 %v504, %v604
        %v606 = vpop.f32.mrb[0].mxu0
        %v607 = vpop.f32.mrb[0].mxu0
        %v608 = vadd.f32 %v504, %v607
        %v609 = vpop.f32.mrb[0].mxu0
        %610 = vmatprep.mubr.bf16.mxu0 0
        %611 = vmatmul.mubr.bf16.gmra.mrb[0].mxu0 %v470
        %v612 = vpop.f32.mrb[0].mxu0
        %v613 = vadd.f32 %v504, %v612
        %v614 = vpop.f32.mrb[0].mxu0
        %v615 = vpop.f32.mrb[0].mxu0
        %v616 = vadd.f32 %v504, %v615
        %v617 = vpop.f32.mrb[0].mxu0
        %618 = vmatprep.mubr.bf16.mxu0 0
        %619 = vmatmul.mubr.bf16.gmra.mrb[0].mxu0 %v471
        %v620 = vpop.f32.mrb[0].mxu0
        %v621 = vadd.f32 %v504, %v620
        %v622 = vpop.f32.mrb[0].mxu0
        %v623 = vpop.f32.mrb[0].mxu0
        %v624 = vadd.f32 %v504, %v623
        %v625 = vpop.f32.mrb[0].mxu0
        %626 = vmatprep.mubr.bf16.mxu0 0
        %627 = vmatmul.mubr.bf16.gmra.mrb[0].mxu0 %v472
        %v628 = vpop.f32.mrb[0].mxu0
        %v629 = vadd.f32 %v504, %v628
        %v630 = vpop.f32.mrb[0].mxu0
        %v631 = vpop.f32.mrb[0].mxu0
        %v632 = vadd.f32 %v504, %v631
        %v633 = vpop.f32.mrb[0].mxu0
        %634 = vmatprep.mubr.bf16.mxu0 0
        %635 = vmatmul.mubr.bf16.gmra.mrb[0].mxu0 %v473
        %v636 = vpop.f32.mrb[0].mxu0
        %v637 = vadd.f32 %v504, %v636
        %v638 = vpop.f32.mrb[0].mxu0
        %v639 = vpop.f32.mrb[0].mxu0
        %v640 = vadd.f32 %v504, %v639
        %v641 = vpop.f32.mrb[0].mxu0
        %642 = vmatprep.mubr.bf16.mxu0 0
        %643 = vmatmul.mubr.bf16.gmra.mrb[0].mxu0 %v474
        %v644 = vpop.f32.mrb[0].mxu0
        %v645 = vadd.f32 %v504, %v644
        %v646 = vpop.f32.mrb[0].mxu0
        %v647 = vpop.f32.mrb[0].mxu0
        %v648 = vadd.f32 %v504, %v647
        %v649 = vpop.f32.mrb[0].mxu0
        %650 = vmatprep.mubr.bf16.mxu0 0
        %651 = vmatmul.mubr.bf16.gmra.mrb[0].mxu0 %v475
        %v652 = vpop.f32.mrb[0].mxu0
        %v653 = vadd.f32 %v504, %v652
        %v654 = vpop.f32.mrb[0].mxu0
        %v655 = vpop.f32.mrb[0].mxu0
        %v656 = vadd.f32 %v504, %v655
        %v657 = vpop.f32.mrb[0].mxu0
        %658 = vmatprep.mubr.bf16.mxu0 0
        %659 = vmatmul.mubr.bf16.gmra.mrb[0].mxu0 %v476
        %v660 = vpop.f32.mrb[0].mxu0
        %v661 = vadd.f32 %v504, %v660
        %v662 = vpop.f32.mrb[0].mxu0
        %v663 = vpop.f32.mrb[0].mxu0
        %v664 = vadd.f32 %v504, %v663
        %v665 = vpop.f32.mrb[0].mxu0
        %666 = vmatprep.mubr.bf16.mxu0 0
        %667 = vmatmul.mubr.bf16.gmra.mrb[0].mxu0 %v477
        %v668 = vpop.f32.mrb[0].mxu0
        %v669 = vadd.f32 %v504, %v668
        %v670 = vpop.f32.mrb[0].mxu0
        %v671 = vpop.f32.mrb[0].mxu0
        %v672 = vadd.f32 %v504, %v671
        %v673 = vpop.f32.mrb[0].mxu0
        %674 = vmatprep.mubr.bf16.mxu0 0
        %675 = vmatmul.mubr.bf16.gmra.mrb[0].mxu0 %v478
        %v676 = vpop.f32.mrb[0].mxu0
        %v677 = vadd.f32 %v504, %v676
        %v678 = vpop.f32.mrb[0].mxu0
        %v679 = vpop.f32.mrb[0].mxu0
        %v680 = vadd.f32 %v504, %v679
        %v681 = vpop.f32.mrb[0].mxu0
        %682 = vmatprep.mubr.bf16.mxu0 0
        %683 = vmatmul.mubr.bf16.gmra.mrb[0].mxu0 %v479
        %v684 = vpop.f32.mrb[0].mxu0
        %v685 = vadd.f32 %v504, %v684
        %v686 = vpop.f32.mrb[0].mxu0
        %v687 = vpop.f32.mrb[0].mxu0
        %v688 = vadd.f32 %v504, %v687
        %v689 = vpop.f32.mrb[0].mxu0
        %690 = vmatprep.mubr.bf16.mxu0 0
        %691 = vmatmul.mubr.bf16.gmra.mrb[0].mxu0 %v480
        %v692 = vpop.f32.mrb[0].mxu0
        %v693 = vadd.f32 %v504, %v692
        %v694 = vpop.f32.mrb[0].mxu0
        %v695 = vpop.f32.mrb[0].mxu0
        %v696 = vadd.f32 %v504, %v695
        %v697 = vpop.f32.mrb[0].mxu0
        %698 = vmatprep.mubr.bf16.mxu0 0
        %699 = vmatmul.mubr.bf16.gmra.mrb[0].mxu0 %v481
        %v700 = vpop.f32.mrb[0].mxu0
        %v701 = vadd.f32 %v504, %v700
        %v702 = vpop.f32.mrb[0].mxu0
        %v703 = vpop.f32.mrb[0].mxu0
        %v704 = vadd.f32 %v504, %v703
        %v705 = vpop.f32.mrb[0].mxu0
        %706 = vmatprep.mubr.bf16.mxu0 0
        %707 = vmatmul.mubr.bf16.gmra.mrb[0].mxu0 %v482
        %v708 = vpop.f32.mrb[0].mxu0
        %v709 = vadd.f32 %v504, %v708
        %v710 = vpop.f32.mrb[0].mxu0
        %v711 = vpop.f32.mrb[0].mxu0
        %v712 = vadd.f32 %v504, %v711
        %v713 = vpop.f32.mrb[0].mxu0
        %714 = vdwg.mxu0
        %vm715 = vcmp.ge.f32.partialorder %v589, 0.0
        %vm716 = vcmp.ge.f32.partialorder %v592, 0.0
        %vm717 = vcmp.ge.f32.partialorder %v597, 0.0
        %vm718 = vcmp.ge.f32.partialorder %v600, 0.0
        %vm719 = vcmp.ge.f32.partialorder %v605, 0.0
        %vm720 = vcmp.ge.f32.partialorder %v608, 0.0
        %vm721 = vcmp.ge.f32.partialorder %v613, 0.0
        %vm722 = vcmp.ge.f32.partialorder %v616, 0.0
        %vm723 = vcmp.ge.f32.partialorder %v621, 0.0
        %vm724 = vcmp.ge.f32.partialorder %v624, 0.0
        %vm725 = vcmp.ge.f32.partialorder %v629, 0.0
        %vm726 = vcmp.ge.f32.partialorder %v632, 0.0
        %vm727 = vcmp.ge.f32.partialorder %v637, 0.0
        %vm728 = vcmp.ge.f32.partialorder %v640, 0.0
        %vm729 = vcmp.ge.f32.partialorder %v645, 0.0
        %vm730 = vcmp.ge.f32.partialorder %v648, 0.0
        %vm731 = vcmp.ge.f32.partialorder %v653, 0.0
        %vm732 = vcmp.ge.f32.partialorder %v656, 0.0
        %vm733 = vcmp.ge.f32.partialorder %v661, 0.0
        %vm734 = vcmp.ge.f32.partialorder %v664, 0.0
        %vm735 = vcmp.ge.f32.partialorder %v669, 0.0
        %vm736 = vcmp.ge.f32.partialorder %v672, 0.0
        %vm737 = vcmp.ge.f32.partialorder %v677, 0.0
        %vm738 = vcmp.ge.f32.partialorder %v680, 0.0
        %vm739 = vcmp.ge.f32.partialorder %v685, 0.0
        %vm740 = vcmp.ge.f32.partialorder %v688, 0.0
        %vm741 = vcmp.ge.f32.partialorder %v693, 0.0
        %vm742 = vcmp.ge.f32.partialorder %v696, 0.0
        %vm743 = vcmp.ge.f32.partialorder %v701, 0.0
        %vm744 = vcmp.ge.f32.partialorder %v704, 0.0
        %vm745 = vcmp.ge.f32.partialorder %v709, 0.0
        %vm746 = vcmp.ge.f32.partialorder %v712, 0.0
        %v747 = vmul.f32 %v589, 0.1
        %v748 = vmul.f32 %v592, 0.1
        %v749 = vmul.f32 %v597, 0.1
        %v750 = vmul.f32 %v600, 0.1
        %v751 = vmul.f32 %v605, 0.1
        %v752 = vmul.f32 %v608, 0.1
        %v753 = vmul.f32 %v613, 0.1
        %v754 = vmul.f32 %v616, 0.1
        %v755 = vmul.f32 %v621, 0.1
        %v756 = vmul.f32 %v624, 0.1
        %v757 = vmul.f32 %v629, 0.1
        %v758 = vmul.f32 %v632, 0.1
        %v759 = vmul.f32 %v637, 0.1
        %v760 = vmul.f32 %v640, 0.1
        %v761 = vmul.f32 %v645, 0.1
        %v762 = vmul.f32 %v648, 0.1
        %v763 = vmul.f32 %v653, 0.1
        %v764 = vmul.f32 %v656, 0.1
        %v765 = vmul.f32 %v661, 0.1
        %v766 = vmul.f32 %v664, 0.1
        %v767 = vmul.f32 %v669, 0.1
        %v768 = vmul.f32 %v672, 0.1
        %v769 = vmul.f32 %v677, 0.1
        %v770 = vmul.f32 %v680, 0.1
        %v771 = vmul.f32 %v685, 0.1
        %v772 = vmul.f32 %v688, 0.1
        %v773 = vmul.f32 %v693, 0.1
        %v774 = vmul.f32 %v696, 0.1
        %v775 = vmul.f32 %v701, 0.1
        %v776 = vmul.f32 %v704, 0.1
        %v777 = vmul.f32 %v709, 0.1
        %v778 = vmul.f32 %v712, 0.1
        %v779 = vsel %vm715, %v589, %v747
        %v780 = vsel %vm716, %v592, %v748
        %v781 = vsel %vm717, %v597, %v749
        %v782 = vsel %vm718, %v600, %v750
        %v783 = vsel %vm719, %v605, %v751
        %v784 = vsel %vm720, %v608, %v752
        %v785 = vsel %vm721, %v613, %v753
        %v786 = vsel %vm722, %v616, %v754
        %v787 = vsel %vm723, %v621, %v755
        %v788 = vsel %vm724, %v624, %v756
        %v789 = vsel %vm725, %v629, %v757
        %v790 = vsel %vm726, %v632, %v758
        %v791 = vsel %vm727, %v637, %v759
        %v792 = vsel %vm728, %v640, %v760
        %v793 = vsel %vm729, %v645, %v761
        %v794 = vsel %vm730, %v648, %v762
        %v795 = vsel %vm731, %v653, %v763
        %v796 = vsel %vm732, %v656, %v764
        %v797 = vsel %vm733, %v661, %v765
        %v798 = vsel %vm734, %v664, %v766
        %v799 = vsel %vm735, %v669, %v767
        %v800 = vsel %vm736, %v672, %v768
        %v801 = vsel %vm737, %v677, %v769
        %v802 = vsel %vm738, %v680, %v770
        %v803 = vsel %vm739, %v685, %v771
        %v804 = vsel %vm740, %v688, %v772
        %v805 = vsel %vm741, %v693, %v773
        %v806 = vsel %vm742, %v696, %v774
        %v807 = vsel %vm743, %v701, %v775
        %v808 = vsel %vm744, %v704, %v776
        %v809 = vsel %vm745, %v709, %v777
        %v810 = vsel %vm746, %v712, %v778
        %v811 = vpack.c.bf16 %v780, %v779
        %v812 = vpack.c.bf16 %v782, %v781
        %v813 = vpack.c.bf16 %v784, %v783
        %v814 = vpack.c.bf16 %v786, %v785
        %v815 = vpack.c.bf16 %v788, %v787
        %v816 = vpack.c.bf16 %v790, %v789
        %v817 = vpack.c.bf16 %v792, %v791
        %v818 = vpack.c.bf16 %v794, %v793
        %v819 = vpack.c.bf16 %v796, %v795
        %v820 = vpack.c.bf16 %v798, %v797
        %v821 = vpack.c.bf16 %v800, %v799
        %v822 = vpack.c.bf16 %v802, %v801
        %v823 = vpack.c.bf16 %v804, %v803
        %v824 = vpack.c.bf16 %v806, %v805
        %v825 = vpack.c.bf16 %v808, %v807
        %v826 = vpack.c.bf16 %v810, %v809
        %v827 = vld [vmem:[%s5] sm:$0xf]
        %v828 = vld [vmem:[%s5 + $0x4] sm:$0xf]
        %v829 = vld [vmem:[%s5 + $0x8] sm:$0xf]
        %v830 = vld [vmem:[%s5 + $0xc] sm:$0xf]
        %v831 = vld [vmem:[%s5 + $0x10] sm:$0xf]
        %v832 = vld [vmem:[%s5 + $0x14] sm:$0xf]
        %v833 = vld [vmem:[%s5 + $0x18] sm:$0xf]
        %v834 = vld [vmem:[%s5 + $0x1c] sm:$0xf]
        %v835 = vld [vmem:[%s5 + $0x20] sm:$0xf]
        %v836 = vld [vmem:[%s5 + $0x24] sm:$0xf]
        %v837 = vld [vmem:[%s5 + $0x28] sm:$0xf]
        %v838 = vld [vmem:[%s5 + $0x2c] sm:$0xf]
        %v839 = vld [vmem:[%s5 + $0x30] sm:$0xf]
        %v840 = vld [vmem:[%s5 + $0x34] sm:$0xf]
        %v841 = vld [vmem:[%s5 + $0x38] sm:$0xf]
        %v842 = vld [vmem:[%s5 + $0x3c] sm:$0xf]
        %v843 = vld [vmem:[%s6] sm:$0x1]
        %v845 = vlaneseq
        %v846 = vshrl.u32 %v845, 7
        %v847 = vsub.s32 0, %v846
        %v848 = vrot.slane %v843, %v847
        %v866 = vunpack.c.l.b16 %v827
        %v867 = vunpack.c.l.b16 %v828
        %v868 = vunpack.c.l.b16 %v829
        %v869 = vunpack.c.l.b16 %v830
        %v870 = vunpack.c.l.b16 %v831
        %v871 = vunpack.c.l.b16 %v832
        %v872 = vunpack.c.l.b16 %v833
        %v873 = vunpack.c.l.b16 %v834
        %v874 = vunpack.c.l.b16 %v835
        %v875 = vunpack.c.l.b16 %v836
        %v876 = vunpack.c.l.b16 %v837
        %v877 = vunpack.c.l.b16 %v838
        %v878 = vunpack.c.l.b16 %v839
        %v879 = vunpack.c.l.b16 %v840
        %v880 = vunpack.c.l.b16 %v841
        %v881 = vunpack.c.l.b16 %v842
        %v882 = vpack.c.b16 %v867, %v866
        %v883 = vpack.c.b16 %v869, %v868
        %v884 = vpack.c.b16 %v871, %v870
        %v885 = vpack.c.b16 %v873, %v872
        %v886 = vpack.c.b16 %v875, %v874
        %v887 = vpack.c.b16 %v877, %v876
        %v888 = vpack.c.b16 %v879, %v878
        %v889 = vpack.c.b16 %v881, %v880
        %898 = vmatprep.subr.bf16.mxu0 0
        %899 = vmatpush1.bf16.msra.mxu0 %v882
        %900 = vmatprep.subr.bf16.mxu0 0
        %901 = vmatpush1.bf16.msra.mxu0 %v883
        %902 = vmatprep.subr.bf16.mxu0 0
        %903 = vmatpush1.bf16.msra.mxu0 %v884
        %904 = vmatprep.subr.bf16.mxu0 0
        %905 = vmatpush1.bf16.msra.mxu0 %v885
        %906 = vmatprep.subr.bf16.mxu0 0
        %907 = vmatpush1.bf16.msra.mxu0 %v886
        %908 = vmatprep.subr.bf16.mxu0 0
        %909 = vmatpush1.bf16.msra.mxu0 %v887
        %910 = vmatprep.subr.bf16.mxu0 0
        %911 = vmatpush1.bf16.msra.mxu0 %v888
        %912 = vmatprep.subr.bf16.mxu0 0
        %913 = vmatpush1.bf16.msra.mxu0 %v889
        %914 = vmatprep.subr.bf16.mxu0 0
        %915 = vmatpush1.bf16.msra.mxu0 0
        %916 = vmatprep.subr.bf16.mxu0 0
        %917 = vmatpush1.bf16.msra.mxu0 0
        %918 = vmatprep.subr.bf16.mxu0 0
        %919 = vmatpush1.bf16.msra.mxu0 0
        %920 = vmatprep.subr.bf16.mxu0 0
        %921 = vmatpush1.bf16.msra.mxu0 0
        %922 = vmatprep.subr.bf16.mxu0 0
        %923 = vmatpush1.bf16.msra.mxu0 0
        %924 = vmatprep.subr.bf16.mxu0 0
        %925 = vmatpush1.bf16.msra.mxu0 0
        %926 = vmatprep.subr.bf16.mxu0 0
        %927 = vmatpush1.bf16.msra.mxu0 0
        %928 = vmatprep.subr.bf16.mxu0 0
        %929 = vmatpush1.bf16.msra.mxu0 0
        %930 = vmatprep.mubr.bf16.mxu0 0
        %931 = vmatmul.mubr.bf16.gmra.mrb[0].mxu0 %v811
        %v932 = vpop.f32.mrb[0].mxu0
        %v933 = vadd.f32 %v848, %v932
        %v934 = vpop.f32.mrb[0].mxu0
        %v935 = vpop.f32.mrb[0].mxu0
        %v936 = vadd.f32 %v848, %v935
        %v937 = vpop.f32.mrb[0].mxu0
        %938 = vmatprep.mubr.bf16.mxu0 0
        %939 = vmatmul.mubr.bf16.gmra.mrb[0].mxu0 %v812
        %v940 = vpop.f32.mrb[0].mxu0
        %v941 = vadd.f32 %v848, %v940
        %v942 = vpop.f32.mrb[0].mxu0
        %v943 = vpop.f32.mrb[0].mxu0
        %v944 = vadd.f32 %v848, %v943
        %v945 = vpop.f32.mrb[0].mxu0
        %946 = vmatprep.mubr.bf16.mxu0 0
        %947 = vmatmul.mubr.bf16.gmra.mrb[0].mxu0 %v813
        %v948 = vpop.f32.mrb[0].mxu0
        %v949 = vadd.f32 %v848, %v948
        %v950 = vpop.f32.mrb[0].mxu0
        %v951 = vpop.f32.mrb[0].mxu0
        %v952 = vadd.f32 %v848, %v951
        %v953 = vpop.f32.mrb[0].mxu0
        %954 = vmatprep.mubr.bf16.mxu0 0
        %955 = vmatmul.mubr.bf16.gmra.mrb[0].mxu0 %v814
        %v956 = vpop.f32.mrb[0].mxu0
        %v957 = vadd.f32 %v848, %v956
        %v958 = vpop.f32.mrb[0].mxu0
        %v959 = vpop.f32.mrb[0].mxu0
        %v960 = vadd.f32 %v848, %v959
        %v961 = vpop.f32.mrb[0].mxu0
        %962 = vmatprep.mubr.bf16.mxu0 0
        %963 = vmatmul.mubr.bf16.gmra.mrb[0].mxu0 %v815
        %v964 = vpop.f32.mrb[0].mxu0
        %v965 = vadd.f32 %v848, %v964
        %v966 = vpop.f32.mrb[0].mxu0
        %v967 = vpop.f32.mrb[0].mxu0
        %v968 = vadd.f32 %v848, %v967
        %v969 = vpop.f32.mrb[0].mxu0
        %970 = vmatprep.mubr.bf16.mxu0 0
        %971 = vmatmul.mubr.bf16.gmra.mrb[0].mxu0 %v816
        %v972 = vpop.f32.mrb[0].mxu0
        %v973 = vadd.f32 %v848, %v972
        %v974 = vpop.f32.mrb[0].mxu0
        %v975 = vpop.f32.mrb[0].mxu0
        %v976 = vadd.f32 %v848, %v975
        %v977 = vpop.f32.mrb[0].mxu0
        %978 = vmatprep.mubr.bf16.mxu0 0
        %979 = vmatmul.mubr.bf16.gmra.mrb[0].mxu0 %v817
        %v980 = vpop.f32.mrb[0].mxu0
        %v981 = vadd.f32 %v848, %v980
        %v982 = vpop.f32.mrb[0].mxu0
        %v983 = vpop.f32.mrb[0].mxu0
        %v984 = vadd.f32 %v848, %v983
        %v985 = vpop.f32.mrb[0].mxu0
        %986 = vmatprep.mubr.bf16.mxu0 0
        %987 = vmatmul.mubr.bf16.gmra.mrb[0].mxu0 %v818
        %v988 = vpop.f32.mrb[0].mxu0
        %v989 = vadd.f32 %v848, %v988
        %v990 = vpop.f32.mrb[0].mxu0
        %v991 = vpop.f32.mrb[0].mxu0
        %v992 = vadd.f32 %v848, %v991
        %v993 = vpop.f32.mrb[0].mxu0
        %994 = vmatprep.mubr.bf16.mxu0 0
        %995 = vmatmul.mubr.bf16.gmra.mrb[0].mxu0 %v819
        %v996 = vpop.f32.mrb[0].mxu0
        %v997 = vadd.f32 %v848, %v996
        %v998 = vpop.f32.mrb[0].mxu0
        %v999 = vpop.f32.mrb[0].mxu0
        %v1000 = vadd.f32 %v848, %v999
        %v1001 = vpop.f32.mrb[0].mxu0
        %1002 = vmatprep.mubr.bf16.mxu0 0
        %1003 = vmatmul.mubr.bf16.gmra.mrb[0].mxu0 %v820
        %v1004 = vpop.f32.mrb[0].mxu0
        %v1005 = vadd.f32 %v848, %v1004
        %v1006 = vpop.f32.mrb[0].mxu0
        %v1007 = vpop.f32.mrb[0].mxu0
        %v1008 = vadd.f32 %v848, %v1007
        %v1009 = vpop.f32.mrb[0].mxu0
        %1010 = vmatprep.mubr.bf16.mxu0 0
        %1011 = vmatmul.mubr.bf16.gmra.mrb[0].mxu0 %v821
        %v1012 = vpop.f32.mrb[0].mxu0
        %v1013 = vadd.f32 %v848, %v1012
        %v1014 = vpop.f32.mrb[0].mxu0
        %v1015 = vpop.f32.mrb[0].mxu0
        %v1016 = vadd.f32 %v848, %v1015
        %v1017 = vpop.f32.mrb[0].mxu0
        %1018 = vmatprep.mubr.bf16.mxu0 0
        %1019 = vmatmul.mubr.bf16.gmra.mrb[0].mxu0 %v822
        %v1020 = vpop.f32.mrb[0].mxu0
        %v1021 = vadd.f32 %v848, %v1020
        %v1022 = vpop.f32.mrb[0].mxu0
        %v1023 = vpop.f32.mrb[0].mxu0
        %v1024 = vadd.f32 %v848, %v1023
        %v1025 = vpop.f32.mrb[0].mxu0
        %1026 = vmatprep.mubr.bf16.mxu0 0
        %1027 = vmatmul.mubr.bf16.gmra.mrb[0].mxu0 %v823
        %v1028 = vpop.f32.mrb[0].mxu0
        %v1029 = vadd.f32 %v848, %v1028
        %v1030 = vpop.f32.mrb[0].mxu0
        %v1031 = vpop.f32.mrb[0].mxu0
        %v1032 = vadd.f32 %v848, %v1031
        %v1033 = vpop.f32.mrb[0].mxu0
        %1034 = vmatprep.mubr.bf16.mxu0 0
        %1035 = vmatmul.mubr.bf16.gmra.mrb[0].mxu0 %v824
        %v1036 = vpop.f32.mrb[0].mxu0
        %v1037 = vadd.f32 %v848, %v1036
        %v1038 = vpop.f32.mrb[0].mxu0
        %v1039 = vpop.f32.mrb[0].mxu0
        %v1040 = vadd.f32 %v848, %v1039
        %v1041 = vpop.f32.mrb[0].mxu0
        %1042 = vmatprep.mubr.bf16.mxu0 0
        %1043 = vmatmul.mubr.bf16.gmra.mrb[0].mxu0 %v825
        %v1044 = vpop.f32.mrb[0].mxu0
        %v1045 = vadd.f32 %v848, %v1044
        %v1046 = vpop.f32.mrb[0].mxu0
        %v1047 = vpop.f32.mrb[0].mxu0
        %v1048 = vadd.f32 %v848, %v1047
        %v1049 = vpop.f32.mrb[0].mxu0
        %1050 = vmatprep.mubr.bf16.mxu0 0
        %1051 = vmatmul.mubr.bf16.gmra.mrb[0].mxu0 %v826
        %v1052 = vpop.f32.mrb[0].mxu0
        %v1053 = vadd.f32 %v848, %v1052
        %v1054 = vpop.f32.mrb[0].mxu0
        %v1055 = vpop.f32.mrb[0].mxu0
        %v1056 = vadd.f32 %v848, %v1055
        %v1057 = vpop.f32.mrb[0].mxu0
        %1058 = vdwg.mxu0
        %vm1059 = vcmp.ge.f32.partialorder %v933, 0.0
        %vm1060 = vcmp.ge.f32.partialorder %v936, 0.0
        %vm1061 = vcmp.ge.f32.partialorder %v941, 0.0
        %vm1062 = vcmp.ge.f32.partialorder %v944, 0.0
        %vm1063 = vcmp.ge.f32.partialorder %v949, 0.0
        %vm1064 = vcmp.ge.f32.partialorder %v952, 0.0
        %vm1065 = vcmp.ge.f32.partialorder %v957, 0.0
        %vm1066 = vcmp.ge.f32.partialorder %v960, 0.0
        %vm1067 = vcmp.ge.f32.partialorder %v965, 0.0
        %vm1068 = vcmp.ge.f32.partialorder %v968, 0.0
        %vm1069 = vcmp.ge.f32.partialorder %v973, 0.0
        %vm1070 = vcmp.ge.f32.partialorder %v976, 0.0
        %vm1071 = vcmp.ge.f32.partialorder %v981, 0.0
        %vm1072 = vcmp.ge.f32.partialorder %v984, 0.0
        %vm1073 = vcmp.ge.f32.partialorder %v989, 0.0
        %vm1074 = vcmp.ge.f32.partialorder %v992, 0.0
        %vm1075 = vcmp.ge.f32.partialorder %v997, 0.0
        %vm1076 = vcmp.ge.f32.partialorder %v1000, 0.0
        %vm1077 = vcmp.ge.f32.partialorder %v1005, 0.0
        %vm1078 = vcmp.ge.f32.partialorder %v1008, 0.0
        %vm1079 = vcmp.ge.f32.partialorder %v1013, 0.0
        %vm1080 = vcmp.ge.f32.partialorder %v1016, 0.0
        %vm1081 = vcmp.ge.f32.partialorder %v1021, 0.0
        %vm1082 = vcmp.ge.f32.partialorder %v1024, 0.0
        %vm1083 = vcmp.ge.f32.partialorder %v1029, 0.0
        %vm1084 = vcmp.ge.f32.partialorder %v1032, 0.0
        %vm1085 = vcmp.ge.f32.partialorder %v1037, 0.0
        %vm1086 = vcmp.ge.f32.partialorder %v1040, 0.0
        %vm1087 = vcmp.ge.f32.partialorder %v1045, 0.0
        %vm1088 = vcmp.ge.f32.partialorder %v1048, 0.0
        %vm1089 = vcmp.ge.f32.partialorder %v1053, 0.0
        %vm1090 = vcmp.ge.f32.partialorder %v1056, 0.0
        %v1091 = vmul.f32 %v933, 0.1
        %v1092 = vmul.f32 %v936, 0.1
        %v1093 = vmul.f32 %v941, 0.1
        %v1094 = vmul.f32 %v944, 0.1
        %v1095 = vmul.f32 %v949, 0.1
        %v1096 = vmul.f32 %v952, 0.1
        %v1097 = vmul.f32 %v957, 0.1
        %v1098 = vmul.f32 %v960, 0.1
        %v1099 = vmul.f32 %v965, 0.1
        %v1100 = vmul.f32 %v968, 0.1
        %v1101 = vmul.f32 %v973, 0.1
        %v1102 = vmul.f32 %v976, 0.1
        %v1103 = vmul.f32 %v981, 0.1
        %v1104 = vmul.f32 %v984, 0.1
        %v1105 = vmul.f32 %v989, 0.1
        %v1106 = vmul.f32 %v992, 0.1
        %v1107 = vmul.f32 %v997, 0.1
        %v1108 = vmul.f32 %v1000, 0.1
        %v1109 = vmul.f32 %v1005, 0.1
        %v1110 = vmul.f32 %v1008, 0.1
        %v1111 = vmul.f32 %v1013, 0.1
        %v1112 = vmul.f32 %v1016, 0.1
        %v1113 = vmul.f32 %v1021, 0.1
        %v1114 = vmul.f32 %v1024, 0.1
        %v1115 = vmul.f32 %v1029, 0.1
        %v1116 = vmul.f32 %v1032, 0.1
        %v1117 = vmul.f32 %v1037, 0.1
        %v1118 = vmul.f32 %v1040, 0.1
        %v1119 = vmul.f32 %v1045, 0.1
        %v1120 = vmul.f32 %v1048, 0.1
        %v1121 = vmul.f32 %v1053, 0.1
        %v1122 = vmul.f32 %v1056, 0.1
        %v1123 = vsel %vm1059, %v933, %v1091
        %v1124 = vsel %vm1060, %v936, %v1092
        %v1125 = vsel %vm1061, %v941, %v1093
        %v1126 = vsel %vm1062, %v944, %v1094
        %v1127 = vsel %vm1063, %v949, %v1095
        %v1128 = vsel %vm1064, %v952, %v1096
        %v1129 = vsel %vm1065, %v957, %v1097
        %v1130 = vsel %vm1066, %v960, %v1098
        %v1131 = vsel %vm1067, %v965, %v1099
        %v1132 = vsel %vm1068, %v968, %v1100
        %v1133 = vsel %vm1069, %v973, %v1101
        %v1134 = vsel %vm1070, %v976, %v1102
        %v1135 = vsel %vm1071, %v981, %v1103
        %v1136 = vsel %vm1072, %v984, %v1104
        %v1137 = vsel %vm1073, %v989, %v1105
        %v1138 = vsel %vm1074, %v992, %v1106
        %v1139 = vsel %vm1075, %v997, %v1107
        %v1140 = vsel %vm1076, %v1000, %v1108
        %v1141 = vsel %vm1077, %v1005, %v1109
        %v1142 = vsel %vm1078, %v1008, %v1110
        %v1143 = vsel %vm1079, %v1013, %v1111
        %v1144 = vsel %vm1080, %v1016, %v1112
        %v1145 = vsel %vm1081, %v1021, %v1113
        %v1146 = vsel %vm1082, %v1024, %v1114
        %v1147 = vsel %vm1083, %v1029, %v1115
        %v1148 = vsel %vm1084, %v1032, %v1116
        %v1149 = vsel %vm1085, %v1037, %v1117
        %v1150 = vsel %vm1086, %v1040, %v1118
        %v1151 = vsel %vm1087, %v1045, %v1119
        %v1152 = vsel %vm1088, %v1048, %v1120
        %v1153 = vsel %vm1089, %v1053, %v1121
        %v1154 = vsel %vm1090, %v1056, %v1122
        %v1155 = vpack.c.bf16 %v1124, %v1123
        %v1156 = vpack.c.bf16 %v1126, %v1125
        %v1157 = vpack.c.bf16 %v1128, %v1127
        %v1158 = vpack.c.bf16 %v1130, %v1129
        %v1159 = vpack.c.bf16 %v1132, %v1131
        %v1160 = vpack.c.bf16 %v1134, %v1133
        %v1161 = vpack.c.bf16 %v1136, %v1135
        %v1162 = vpack.c.bf16 %v1138, %v1137
        %v1163 = vpack.c.bf16 %v1140, %v1139
        %v1164 = vpack.c.bf16 %v1142, %v1141
        %v1165 = vpack.c.bf16 %v1144, %v1143
        %v1166 = vpack.c.bf16 %v1146, %v1145
        %v1167 = vpack.c.bf16 %v1148, %v1147
        %v1168 = vpack.c.bf16 %v1150, %v1149
        %v1169 = vpack.c.bf16 %v1152, %v1151
        %v1170 = vpack.c.bf16 %v1154, %v1153
        %v1171 = vld [vmem:[%s7] sm:$0xf]
        %v1172 = vld [vmem:[%s7 + $0x4] sm:$0xf]
        %v1173 = vld [vmem:[%s7 + $0x8] sm:$0xf]
        %v1174 = vld [vmem:[%s7 + $0xc] sm:$0xf]
        %v1175 = vld [vmem:[%s7 + $0x10] sm:$0xf]
        %v1176 = vld [vmem:[%s7 + $0x14] sm:$0xf]
        %v1177 = vld [vmem:[%s7 + $0x18] sm:$0xf]
        %v1178 = vld [vmem:[%s7 + $0x1c] sm:$0xf]
        %v1179 = vld [vmem:[%s7 + $0x20] sm:$0xf]
        %v1180 = vld [vmem:[%s7 + $0x24] sm:$0xf]
        %v1181 = vld [vmem:[%s7 + $0x28] sm:$0xf]
        %v1182 = vld [vmem:[%s7 + $0x2c] sm:$0xf]
        %v1183 = vld [vmem:[%s7 + $0x30] sm:$0xf]
        %v1184 = vld [vmem:[%s7 + $0x34] sm:$0xf]
        %v1185 = vld [vmem:[%s7 + $0x38] sm:$0xf]
        %v1186 = vld [vmem:[%s7 + $0x3c] sm:$0xf]
        %v1187 = vld [vmem:[%s8] sm:$0x1]
        %v1189 = vlaneseq
        %v1190 = vshrl.u32 %v1189, 7
        %v1191 = vsub.s32 0, %v1190
        %v1192 = vrot.slane %v1187, %v1191
        %v1210 = vunpack.c.l.b16 %v1171
        %v1211 = vunpack.c.l.b16 %v1172
        %v1212 = vunpack.c.l.b16 %v1173
        %v1213 = vunpack.c.l.b16 %v1174
        %v1214 = vunpack.c.l.b16 %v1175
        %v1215 = vunpack.c.l.b16 %v1176
        %v1216 = vunpack.c.l.b16 %v1177
        %v1217 = vunpack.c.l.b16 %v1178
        %v1218 = vunpack.c.l.b16 %v1179
        %v1219 = vunpack.c.l.b16 %v1180
        %v1220 = vunpack.c.l.b16 %v1181
        %v1221 = vunpack.c.l.b16 %v1182
        %v1222 = vunpack.c.l.b16 %v1183
        %v1223 = vunpack.c.l.b16 %v1184
        %v1224 = vunpack.c.l.b16 %v1185
        %v1225 = vunpack.c.l.b16 %v1186
        %v1226 = vpack.c.b16 %v1211, %v1210
        %v1227 = vpack.c.b16 %v1213, %v1212
        %v1228 = vpack.c.b16 %v1215, %v1214
        %v1229 = vpack.c.b16 %v1217, %v1216
        %v1230 = vpack.c.b16 %v1219, %v1218
        %v1231 = vpack.c.b16 %v1221, %v1220
        %v1232 = vpack.c.b16 %v1223, %v1222
        %v1233 = vpack.c.b16 %v1225, %v1224
        %1242 = vmatprep.subr.bf16.mxu0 0
        %1243 = vmatpush1.bf16.msra.mxu0 %v1226
        %1244 = vmatprep.subr.bf16.mxu0 0
        %1245 = vmatpush1.bf16.msra.mxu0 %v1227
        %1246 = vmatprep.subr.bf16.mxu0 0
        %1247 = vmatpush1.bf16.msra.mxu0 %v1228
        %1248 = vmatprep.subr.bf16.mxu0 0
        %1249 = vmatpush1.bf16.msra.mxu0 %v1229
        %1250 = vmatprep.subr.bf16.mxu0 0
        %1251 = vmatpush1.bf16.msra.mxu0 %v1230
        %1252 = vmatprep.subr.bf16.mxu0 0
        %1253 = vmatpush1.bf16.msra.mxu0 %v1231
        %1254 = vmatprep.subr.bf16.mxu0 0
        %1255 = vmatpush1.bf16.msra.mxu0 %v1232
        %1256 = vmatprep.subr.bf16.mxu0 0
        %1257 = vmatpush1.bf16.msra.mxu0 %v1233
        %1258 = vmatprep.subr.bf16.mxu0 0
        %1259 = vmatpush1.bf16.msra.mxu0 0
        %1260 = vmatprep.subr.bf16.mxu0 0
        %1261 = vmatpush1.bf16.msra.mxu0 0
        %1262 = vmatprep.subr.bf16.mxu0 0
        %1263 = vmatpush1.bf16.msra.mxu0 0
        %1264 = vmatprep.subr.bf16.mxu0 0
        %1265 = vmatpush1.bf16.msra.mxu0 0
        %1266 = vmatprep.subr.bf16.mxu0 0
        %1267 = vmatpush1.bf16.msra.mxu0 0
        %1268 = vmatprep.subr.bf16.mxu0 0
        %1269 = vmatpush1.bf16.msra.mxu0 0
        %1270 = vmatprep.subr.bf16.mxu0 0
        %1271 = vmatpush1.bf16.msra.mxu0 0
        %1272 = vmatprep.subr.bf16.mxu0 0
        %1273 = vmatpush1.bf16.msra.mxu0 0
        %1274 = vmatprep.mubr.bf16.mxu0 0
        %1275 = vmatmul.mubr.bf16.gmra.mrb[0].mxu0 %v1155
        %v1276 = vpop.f32.mrb[0].mxu0
        %v1277 = vadd.f32 %v1192, %v1276
        %v1278 = vpop.f32.mrb[0].mxu0
        %v1279 = vpop.f32.mrb[0].mxu0
        %v1280 = vadd.f32 %v1192, %v1279
        %v1281 = vpop.f32.mrb[0].mxu0
        %1282 = vmatprep.mubr.bf16.mxu0 0
        %1283 = vmatmul.mubr.bf16.gmra.mrb[0].mxu0 %v1156
        %v1284 = vpop.f32.mrb[0].mxu0
        %v1285 = vadd.f32 %v1192, %v1284
        %v1286 = vpop.f32.mrb[0].mxu0
        %v1287 = vpop.f32.mrb[0].mxu0
        %v1288 = vadd.f32 %v1192, %v1287
        %v1289 = vpop.f32.mrb[0].mxu0
        %1290 = vmatprep.mubr.bf16.mxu0 0
        %1291 = vmatmul.mubr.bf16.gmra.mrb[0].mxu0 %v1157
        %v1292 = vpop.f32.mrb[0].mxu0
        %v1293 = vadd.f32 %v1192, %v1292
        %v1294 = vpop.f32.mrb[0].mxu0
        %v1295 = vpop.f32.mrb[0].mxu0
        %v1296 = vadd.f32 %v1192, %v1295
        %v1297 = vpop.f32.mrb[0].mxu0
        %1298 = vmatprep.mubr.bf16.mxu0 0
        %1299 = vmatmul.mubr.bf16.gmra.mrb[0].mxu0 %v1158
        %v1300 = vpop.f32.mrb[0].mxu0
        %v1301 = vadd.f32 %v1192, %v1300
        %v1302 = vpop.f32.mrb[0].mxu0
        %v1303 = vpop.f32.mrb[0].mxu0
        %v1304 = vadd.f32 %v1192, %v1303
        %v1305 = vpop.f32.mrb[0].mxu0
        %1306 = vmatprep.mubr.bf16.mxu0 0
        %1307 = vmatmul.mubr.bf16.gmra.mrb[0].mxu0 %v1159
        %v1308 = vpop.f32.mrb[0].mxu0
        %v1309 = vadd.f32 %v1192, %v1308
        %v1310 = vpop.f32.mrb[0].mxu0
        %v1311 = vpop.f32.mrb[0].mxu0
        %v1312 = vadd.f32 %v1192, %v1311
        %v1313 = vpop.f32.mrb[0].mxu0
        %1314 = vmatprep.mubr.bf16.mxu0 0
        %1315 = vmatmul.mubr.bf16.gmra.mrb[0].mxu0 %v1160
        %v1316 = vpop.f32.mrb[0].mxu0
        %v1317 = vadd.f32 %v1192, %v1316
        %v1318 = vpop.f32.mrb[0].mxu0
        %v1319 = vpop.f32.mrb[0].mxu0
        %v1320 = vadd.f32 %v1192, %v1319
        %v1321 = vpop.f32.mrb[0].mxu0
        %1322 = vmatprep.mubr.bf16.mxu0 0
        %1323 = vmatmul.mubr.bf16.gmra.mrb[0].mxu0 %v1161
        %v1324 = vpop.f32.mrb[0].mxu0
        %v1325 = vadd.f32 %v1192, %v1324
        %v1326 = vpop.f32.mrb[0].mxu0
        %v1327 = vpop.f32.mrb[0].mxu0
        %v1328 = vadd.f32 %v1192, %v1327
        %v1329 = vpop.f32.mrb[0].mxu0
        %1330 = vmatprep.mubr.bf16.mxu0 0
        %1331 = vmatmul.mubr.bf16.gmra.mrb[0].mxu0 %v1162
        %v1332 = vpop.f32.mrb[0].mxu0
        %v1333 = vadd.f32 %v1192, %v1332
        %v1334 = vpop.f32.mrb[0].mxu0
        %v1335 = vpop.f32.mrb[0].mxu0
        %v1336 = vadd.f32 %v1192, %v1335
        %v1337 = vpop.f32.mrb[0].mxu0
        %1338 = vmatprep.mubr.bf16.mxu0 0
        %1339 = vmatmul.mubr.bf16.gmra.mrb[0].mxu0 %v1163
        %v1340 = vpop.f32.mrb[0].mxu0
        %v1341 = vadd.f32 %v1192, %v1340
        %v1342 = vpop.f32.mrb[0].mxu0
        %v1343 = vpop.f32.mrb[0].mxu0
        %v1344 = vadd.f32 %v1192, %v1343
        %v1345 = vpop.f32.mrb[0].mxu0
        %1346 = vmatprep.mubr.bf16.mxu0 0
        %1347 = vmatmul.mubr.bf16.gmra.mrb[0].mxu0 %v1164
        %v1348 = vpop.f32.mrb[0].mxu0
        %v1349 = vadd.f32 %v1192, %v1348
        %v1350 = vpop.f32.mrb[0].mxu0
        %v1351 = vpop.f32.mrb[0].mxu0
        %v1352 = vadd.f32 %v1192, %v1351
        %v1353 = vpop.f32.mrb[0].mxu0
        %1354 = vmatprep.mubr.bf16.mxu0 0
        %1355 = vmatmul.mubr.bf16.gmra.mrb[0].mxu0 %v1165
        %v1356 = vpop.f32.mrb[0].mxu0
        %v1357 = vadd.f32 %v1192, %v1356
        %v1358 = vpop.f32.mrb[0].mxu0
        %v1359 = vpop.f32.mrb[0].mxu0
        %v1360 = vadd.f32 %v1192, %v1359
        %v1361 = vpop.f32.mrb[0].mxu0
        %1362 = vmatprep.mubr.bf16.mxu0 0
        %1363 = vmatmul.mubr.bf16.gmra.mrb[0].mxu0 %v1166
        %v1364 = vpop.f32.mrb[0].mxu0
        %v1365 = vadd.f32 %v1192, %v1364
        %v1366 = vpop.f32.mrb[0].mxu0
        %v1367 = vpop.f32.mrb[0].mxu0
        %v1368 = vadd.f32 %v1192, %v1367
        %v1369 = vpop.f32.mrb[0].mxu0
        %1370 = vmatprep.mubr.bf16.mxu0 0
        %1371 = vmatmul.mubr.bf16.gmra.mrb[0].mxu0 %v1167
        %v1372 = vpop.f32.mrb[0].mxu0
        %v1373 = vadd.f32 %v1192, %v1372
        %v1374 = vpop.f32.mrb[0].mxu0
        %v1375 = vpop.f32.mrb[0].mxu0
        %v1376 = vadd.f32 %v1192, %v1375
        %v1377 = vpop.f32.mrb[0].mxu0
        %1378 = vmatprep.mubr.bf16.mxu0 0
        %1379 = vmatmul.mubr.bf16.gmra.mrb[0].mxu0 %v1168
        %v1380 = vpop.f32.mrb[0].mxu0
        %v1381 = vadd.f32 %v1192, %v1380
        %v1382 = vpop.f32.mrb[0].mxu0
        %v1383 = vpop.f32.mrb[0].mxu0
        %v1384 = vadd.f32 %v1192, %v1383
        %v1385 = vpop.f32.mrb[0].mxu0
        %1386 = vmatprep.mubr.bf16.mxu0 0
        %1387 = vmatmul.mubr.bf16.gmra.mrb[0].mxu0 %v1169
        %v1388 = vpop.f32.mrb[0].mxu0
        %v1389 = vadd.f32 %v1192, %v1388
        %v1390 = vpop.f32.mrb[0].mxu0
        %v1391 = vpop.f32.mrb[0].mxu0
        %v1392 = vadd.f32 %v1192, %v1391
        %v1393 = vpop.f32.mrb[0].mxu0
        %1394 = vmatprep.mubr.bf16.mxu0 0
        %1395 = vmatmul.mubr.bf16.gmra.mrb[0].mxu0 %v1170
        %v1396 = vpop.f32.mrb[0].mxu0
        %v1397 = vadd.f32 %v1192, %v1396
        %v1398 = vpop.f32.mrb[0].mxu0
        %v1399 = vpop.f32.mrb[0].mxu0
        %v1400 = vadd.f32 %v1192, %v1399
        %v1401 = vpop.f32.mrb[0].mxu0
        %1402 = vdwg.mxu0
        %vm1403 = vcmp.ge.f32.partialorder %v1277, 0.0
        %vm1404 = vcmp.ge.f32.partialorder %v1280, 0.0
        %vm1405 = vcmp.ge.f32.partialorder %v1285, 0.0
        %vm1406 = vcmp.ge.f32.partialorder %v1288, 0.0
        %vm1407 = vcmp.ge.f32.partialorder %v1293, 0.0
        %vm1408 = vcmp.ge.f32.partialorder %v1296, 0.0
        %vm1409 = vcmp.ge.f32.partialorder %v1301, 0.0
        %vm1410 = vcmp.ge.f32.partialorder %v1304, 0.0
        %vm1411 = vcmp.ge.f32.partialorder %v1309, 0.0
        %vm1412 = vcmp.ge.f32.partialorder %v1312, 0.0
        %vm1413 = vcmp.ge.f32.partialorder %v1317, 0.0
        %vm1414 = vcmp.ge.f32.partialorder %v1320, 0.0
        %vm1415 = vcmp.ge.f32.partialorder %v1325, 0.0
        %vm1416 = vcmp.ge.f32.partialorder %v1328, 0.0
        %vm1417 = vcmp.ge.f32.partialorder %v1333, 0.0
        %vm1418 = vcmp.ge.f32.partialorder %v1336, 0.0
        %vm1419 = vcmp.ge.f32.partialorder %v1341, 0.0
        %vm1420 = vcmp.ge.f32.partialorder %v1344, 0.0
        %vm1421 = vcmp.ge.f32.partialorder %v1349, 0.0
        %vm1422 = vcmp.ge.f32.partialorder %v1352, 0.0
        %vm1423 = vcmp.ge.f32.partialorder %v1357, 0.0
        %vm1424 = vcmp.ge.f32.partialorder %v1360, 0.0
        %vm1425 = vcmp.ge.f32.partialorder %v1365, 0.0
        %vm1426 = vcmp.ge.f32.partialorder %v1368, 0.0
        %vm1427 = vcmp.ge.f32.partialorder %v1373, 0.0
        %vm1428 = vcmp.ge.f32.partialorder %v1376, 0.0
        %vm1429 = vcmp.ge.f32.partialorder %v1381, 0.0
        %vm1430 = vcmp.ge.f32.partialorder %v1384, 0.0
        %vm1431 = vcmp.ge.f32.partialorder %v1389, 0.0
        %vm1432 = vcmp.ge.f32.partialorder %v1392, 0.0
        %vm1433 = vcmp.ge.f32.partialorder %v1397, 0.0
        %vm1434 = vcmp.ge.f32.partialorder %v1400, 0.0
        %v1435 = vmul.f32 %v1277, 0.1
        %v1436 = vmul.f32 %v1280, 0.1
        %v1437 = vmul.f32 %v1285, 0.1
        %v1438 = vmul.f32 %v1288, 0.1
        %v1439 = vmul.f32 %v1293, 0.1
        %v1440 = vmul.f32 %v1296, 0.1
        %v1441 = vmul.f32 %v1301, 0.1
        %v1442 = vmul.f32 %v1304, 0.1
        %v1443 = vmul.f32 %v1309, 0.1
        %v1444 = vmul.f32 %v1312, 0.1
        %v1445 = vmul.f32 %v1317, 0.1
        %v1446 = vmul.f32 %v1320, 0.1
        %v1447 = vmul.f32 %v1325, 0.1
        %v1448 = vmul.f32 %v1328, 0.1
        %v1449 = vmul.f32 %v1333, 0.1
        %v1450 = vmul.f32 %v1336, 0.1
        %v1451 = vmul.f32 %v1341, 0.1
        %v1452 = vmul.f32 %v1344, 0.1
        %v1453 = vmul.f32 %v1349, 0.1
        %v1454 = vmul.f32 %v1352, 0.1
        %v1455 = vmul.f32 %v1357, 0.1
        %v1456 = vmul.f32 %v1360, 0.1
        %v1457 = vmul.f32 %v1365, 0.1
        %v1458 = vmul.f32 %v1368, 0.1
        %v1459 = vmul.f32 %v1373, 0.1
        %v1460 = vmul.f32 %v1376, 0.1
        %v1461 = vmul.f32 %v1381, 0.1
        %v1462 = vmul.f32 %v1384, 0.1
        %v1463 = vmul.f32 %v1389, 0.1
        %v1464 = vmul.f32 %v1392, 0.1
        %v1465 = vmul.f32 %v1397, 0.1
        %v1466 = vmul.f32 %v1400, 0.1
        %v1467 = vsel %vm1403, %v1277, %v1435
        %v1468 = vsel %vm1404, %v1280, %v1436
        %v1469 = vsel %vm1405, %v1285, %v1437
        %v1470 = vsel %vm1406, %v1288, %v1438
        %v1471 = vsel %vm1407, %v1293, %v1439
        %v1472 = vsel %vm1408, %v1296, %v1440
        %v1473 = vsel %vm1409, %v1301, %v1441
        %v1474 = vsel %vm1410, %v1304, %v1442
        %v1475 = vsel %vm1411, %v1309, %v1443
        %v1476 = vsel %vm1412, %v1312, %v1444
        %v1477 = vsel %vm1413, %v1317, %v1445
        %v1478 = vsel %vm1414, %v1320, %v1446
        %v1479 = vsel %vm1415, %v1325, %v1447
        %v1480 = vsel %vm1416, %v1328, %v1448
        %v1481 = vsel %vm1417, %v1333, %v1449
        %v1482 = vsel %vm1418, %v1336, %v1450
        %v1483 = vsel %vm1419, %v1341, %v1451
        %v1484 = vsel %vm1420, %v1344, %v1452
        %v1485 = vsel %vm1421, %v1349, %v1453
        %v1486 = vsel %vm1422, %v1352, %v1454
        %v1487 = vsel %vm1423, %v1357, %v1455
        %v1488 = vsel %vm1424, %v1360, %v1456
        %v1489 = vsel %vm1425, %v1365, %v1457
        %v1490 = vsel %vm1426, %v1368, %v1458
        %v1491 = vsel %vm1427, %v1373, %v1459
        %v1492 = vsel %vm1428, %v1376, %v1460
        %v1493 = vsel %vm1429, %v1381, %v1461
        %v1494 = vsel %vm1430, %v1384, %v1462
        %v1495 = vsel %vm1431, %v1389, %v1463
        %v1496 = vsel %vm1432, %v1392, %v1464
        %v1497 = vsel %vm1433, %v1397, %v1465
        %v1498 = vsel %vm1434, %v1400, %v1466
        %v1499 = vpack.c.bf16 %v1468, %v1467
        %v1500 = vpack.c.bf16 %v1470, %v1469
        %v1501 = vpack.c.bf16 %v1472, %v1471
        %v1502 = vpack.c.bf16 %v1474, %v1473
        %v1503 = vpack.c.bf16 %v1476, %v1475
        %v1504 = vpack.c.bf16 %v1478, %v1477
        %v1505 = vpack.c.bf16 %v1480, %v1479
        %v1506 = vpack.c.bf16 %v1482, %v1481
        %v1507 = vpack.c.bf16 %v1484, %v1483
        %v1508 = vpack.c.bf16 %v1486, %v1485
        %v1509 = vpack.c.bf16 %v1488, %v1487
        %v1510 = vpack.c.bf16 %v1490, %v1489
        %v1511 = vpack.c.bf16 %v1492, %v1491
        %v1512 = vpack.c.bf16 %v1494, %v1493
        %v1513 = vpack.c.bf16 %v1496, %v1495
        %v1514 = vpack.c.bf16 %v1498, %v1497
        %s1515 = sld [smem:[#allocation2 + $0x1]]
        %s1516 = sld [smem:[#allocation2 + $0x2]]
        %s1517 = sld [smem:[#allocation2 + $0x3]]
        %s1518 = sld [smem:[#allocation2 + $0x4]]
        %s1519 = sld [smem:[#allocation6]]
        %s1520 = sld [smem:[#allocation6 + $0x1]]
        %s1521 = sld [smem:[#allocation6 + $0x2]]
        %s1522 = sld [smem:[#allocation6 + $0x3]]
        %s1523 = sld [smem:[#allocation6 + $0x4]]
        %v1524 = vld [vmem:[%s9] sm:$0xf]
        %v1525 = vld [vmem:[%s9 + $0x4] sm:$0xf]
        %v1526 = vld [vmem:[%s9 + $0x8] sm:$0xf]
        %v1527 = vld [vmem:[%s9 + $0xc] sm:$0xf]
        %v1528 = vld [vmem:[%s9 + $0x10] sm:$0xf]
        %v1529 = vld [vmem:[%s9 + $0x14] sm:$0xf]
        %v1530 = vld [vmem:[%s9 + $0x18] sm:$0xf]
        %v1531 = vld [vmem:[%s9 + $0x1c] sm:$0xf]
        %v1532 = vld [vmem:[%s9 + $0x20] sm:$0xf]
        %v1533 = vld [vmem:[%s9 + $0x24] sm:$0xf]
        %v1534 = vld [vmem:[%s9 + $0x28] sm:$0xf]
        %v1535 = vld [vmem:[%s9 + $0x2c] sm:$0xf]
        %v1536 = vld [vmem:[%s9 + $0x30] sm:$0xf]
        %v1537 = vld [vmem:[%s9 + $0x34] sm:$0xf]
        %v1538 = vld [vmem:[%s9 + $0x38] sm:$0xf]
        %v1539 = vld [vmem:[%s9 + $0x3c] sm:$0xf]
        %v1540 = vld [vmem:[%s10] sm:$0x1]
        %v1542 = vlaneseq
        %v1543 = vshrl.u32 %v1542, 7
        %v1544 = vsub.s32 0, %v1543
        %v1545 = vrot.slane %v1540, %v1544
        %v1563 = vunpack.c.l.b16 %v1524
        %v1564 = vunpack.c.l.b16 %v1525
        %v1565 = vunpack.c.l.b16 %v1526
        %v1566 = vunpack.c.l.b16 %v1527
        %v1567 = vunpack.c.l.b16 %v1528
        %v1568 = vunpack.c.l.b16 %v1529
        %v1569 = vunpack.c.l.b16 %v1530
        %v1570 = vunpack.c.l.b16 %v1531
        %v1571 = vunpack.c.l.b16 %v1532
        %v1572 = vunpack.c.l.b16 %v1533
        %v1573 = vunpack.c.l.b16 %v1534
        %v1574 = vunpack.c.l.b16 %v1535
        %v1575 = vunpack.c.l.b16 %v1536
        %v1576 = vunpack.c.l.b16 %v1537
        %v1577 = vunpack.c.l.b16 %v1538
        %v1578 = vunpack.c.l.b16 %v1539
        %v1579 = vpack.c.b16 %v1564, %v1563
        %v1580 = vpack.c.b16 %v1566, %v1565
        %v1581 = vpack.c.b16 %v1568, %v1567
        %v1582 = vpack.c.b16 %v1570, %v1569
        %v1583 = vpack.c.b16 %v1572, %v1571
        %v1584 = vpack.c.b16 %v1574, %v1573
        %v1585 = vpack.c.b16 %v1576, %v1575
        %v1586 = vpack.c.b16 %v1578, %v1577
        %1595 = vmatprep.subr.bf16.mxu0 0
        %1596 = vmatpush1.bf16.msra.mxu0 %v1579
        %1597 = vmatprep.subr.bf16.mxu0 0
        %1598 = vmatpush1.bf16.msra.mxu0 %v1580
        %1599 = vmatprep.subr.bf16.mxu0 0
        %1600 = vmatpush1.bf16.msra.mxu0 %v1581
        %1601 = vmatprep.subr.bf16.mxu0 0
        %1602 = vmatpush1.bf16.msra.mxu0 %v1582
        %1603 = vmatprep.subr.bf16.mxu0 0
        %1604 = vmatpush1.bf16.msra.mxu0 %v1583
        %1605 = vmatprep.subr.bf16.mxu0 0
        %1606 = vmatpush1.bf16.msra.mxu0 %v1584
        %1607 = vmatprep.subr.bf16.mxu0 0
        %1608 = vmatpush1.bf16.msra.mxu0 %v1585
        %1609 = vmatprep.subr.bf16.mxu0 0
        %1610 = vmatpush1.bf16.msra.mxu0 %v1586
        %1611 = vmatprep.subr.bf16.mxu0 0
        %1612 = vmatpush1.bf16.msra.mxu0 0
        %1613 = vmatprep.subr.bf16.mxu0 0
        %1614 = vmatpush1.bf16.msra.mxu0 0
        %1615 = vmatprep.subr.bf16.mxu0 0
        %1616 = vmatpush1.bf16.msra.mxu0 0
        %1617 = vmatprep.subr.bf16.mxu0 0
        %1618 = vmatpush1.bf16.msra.mxu0 0
        %1619 = vmatprep.subr.bf16.mxu0 0
        %1620 = vmatpush1.bf16.msra.mxu0 0
        %1621 = vmatprep.subr.bf16.mxu0 0
        %1622 = vmatpush1.bf16.msra.mxu0 0
        %1623 = vmatprep.subr.bf16.mxu0 0
        %1624 = vmatpush1.bf16.msra.mxu0 0
        %1625 = vmatprep.subr.bf16.mxu0 0
        %1626 = vmatpush1.bf16.msra.mxu0 0
        %1627 = vmatprep.mubr.bf16.mxu0 0
        %1628 = vmatmul.mubr.bf16.gmra.mrb[0].mxu0 %v1499
        %v1629 = vpop.f32.mrb[0].mxu0
        %v1630 = vadd.f32 %v1545, %v1629
        %v1631 = vpop.f32.mrb[0].mxu0
        %v1632 = vpop.f32.mrb[0].mxu0
        %v1633 = vadd.f32 %v1545, %v1632
        %v1634 = vpop.f32.mrb[0].mxu0
        %1635 = vmatprep.mubr.bf16.mxu0 0
        %1636 = vmatmul.mubr.bf16.gmra.mrb[0].mxu0 %v1500
        %v1637 = vpop.f32.mrb[0].mxu0
        %v1638 = vadd.f32 %v1545, %v1637
        %v1639 = vpop.f32.mrb[0].mxu0
        %v1640 = vpop.f32.mrb[0].mxu0
        %v1641 = vadd.f32 %v1545, %v1640
        %v1642 = vpop.f32.mrb[0].mxu0
        %1643 = vmatprep.mubr.bf16.mxu0 0
        %1644 = vmatmul.mubr.bf16.gmra.mrb[0].mxu0 %v1501
        %v1645 = vpop.f32.mrb[0].mxu0
        %v1646 = vadd.f32 %v1545, %v1645
        %v1647 = vpop.f32.mrb[0].mxu0
        %v1648 = vpop.f32.mrb[0].mxu0
        %v1649 = vadd.f32 %v1545, %v1648
        %v1650 = vpop.f32.mrb[0].mxu0
        %1651 = vmatprep.mubr.bf16.mxu0 0
        %1652 = vmatmul.mubr.bf16.gmra.mrb[0].mxu0 %v1502
        %v1653 = vpop.f32.mrb[0].mxu0
        %v1654 = vadd.f32 %v1545, %v1653
        %v1655 = vpop.f32.mrb[0].mxu0
        %v1656 = vpop.f32.mrb[0].mxu0
        %v1657 = vadd.f32 %v1545, %v1656
        %v1658 = vpop.f32.mrb[0].mxu0
        %1659 = vdwg.mxu0
        %v1660 = vstv %s1519
        %v1661 = vstv %s1515
        %vm1662 = vcmp.gt.f32.partialorder %v1630, %v1661
        %vm1663 = vcmp.gt.f32.partialorder %v1633, %v1661
        %vm1664 = vcmp.gt.f32.partialorder %v1638, %v1661
        %vm1665 = vcmp.gt.f32.partialorder %v1641, %v1661
        %vm1666 = vcmp.gt.f32.partialorder %v1646, %v1661
        %vm1667 = vcmp.gt.f32.partialorder %v1649, %v1661
        %vm1668 = vcmp.gt.f32.partialorder %v1654, %v1661
        %vm1669 = vcmp.gt.f32.partialorder %v1657, %v1661
        %v1670 = vstv %s1520
        %v1671 = vsel %vm1662, %v1670, 0
        %v1672 = vsel %vm1663, %v1670, 0
        %v1673 = vsel %vm1664, %v1670, 0
        %v1674 = vsel %vm1665, %v1670, 0
        %v1675 = vsel %vm1666, %v1670, 0
        %v1676 = vsel %vm1667, %v1670, 0
        %v1677 = vsel %vm1668, %v1670, 0
        %v1678 = vsel %vm1669, %v1670, 0
        %v1679 = vadd.s32 %v1660, %v1671
        %v1680 = vadd.s32 %v1660, %v1672
        %v1681 = vadd.s32 %v1660, %v1673
        %v1682 = vadd.s32 %v1660, %v1674
        %v1683 = vadd.s32 %v1660, %v1675
        %v1684 = vadd.s32 %v1660, %v1676
        %v1685 = vadd.s32 %v1660, %v1677
        %v1686 = vadd.s32 %v1660, %v1678
        %v1687 = vstv %s1516
        %vm1688 = vcmp.gt.f32.partialorder %v1630, %v1687
        %vm1689 = vcmp.gt.f32.partialorder %v1633, %v1687
        %vm1690 = vcmp.gt.f32.partialorder %v1638, %v1687
        %vm1691 = vcmp.gt.f32.partialorder %v1641, %v1687
        %vm1692 = vcmp.gt.f32.partialorder %v1646, %v1687
        %vm1693 = vcmp.gt.f32.partialorder %v1649, %v1687
        %vm1694 = vcmp.gt.f32.partialorder %v1654, %v1687
        %vm1695 = vcmp.gt.f32.partialorder %v1657, %v1687
        %v1696 = vstv %s1521
        %v1697 = vsel %vm1688, %v1696, 0
        %v1698 = vsel %vm1689, %v1696, 0
        %v1699 = vsel %vm1690, %v1696, 0
        %v1700 = vsel %vm1691, %v1696, 0
        %v1701 = vsel %vm1692, %v1696, 0
        %v1702 = vsel %vm1693, %v1696, 0
        %v1703 = vsel %vm1694, %v1696, 0
        %v1704 = vsel %vm1695, %v1696, 0
        %v1705 = vadd.s32 %v1679, %v1697
        %v1706 = vadd.s32 %v1680, %v1698
        %v1707 = vadd.s32 %v1681, %v1699
        %v1708 = vadd.s32 %v1682, %v1700
        %v1709 = vadd.s32 %v1683, %v1701
        %v1710 = vadd.s32 %v1684, %v1702
        %v1711 = vadd.s32 %v1685, %v1703
        %v1712 = vadd.s32 %v1686, %v1704
        %v1713 = vstv %s1517
        %vm1714 = vcmp.gt.f32.partialorder %v1630, %v1713
        %vm1715 = vcmp.gt.f32.partialorder %v1633, %v1713
        %vm1716 = vcmp.gt.f32.partialorder %v1638, %v1713
        %vm1717 = vcmp.gt.f32.partialorder %v1641, %v1713
        %vm1718 = vcmp.gt.f32.partialorder %v1646, %v1713
        %vm1719 = vcmp.gt.f32.partialorder %v1649, %v1713
        %vm1720 = vcmp.gt.f32.partialorder %v1654, %v1713
        %vm1721 = vcmp.gt.f32.partialorder %v1657, %v1713
        %v1722 = vstv %s1522
        %v1723 = vsel %vm1714, %v1722, 0
        %v1724 = vsel %vm1715, %v1722, 0
        %v1725 = vsel %vm1716, %v1722, 0
        %v1726 = vsel %vm1717, %v1722, 0
        %v1727 = vsel %vm1718, %v1722, 0
        %v1728 = vsel %vm1719, %v1722, 0
        %v1729 = vsel %vm1720, %v1722, 0
        %v1730 = vsel %vm1721, %v1722, 0
        %v1731 = vadd.s32 %v1705, %v1723
        %v1732 = vadd.s32 %v1706, %v1724
        %v1733 = vadd.s32 %v1707, %v1725
        %v1734 = vadd.s32 %v1708, %v1726
        %v1735 = vadd.s32 %v1709, %v1727
        %v1736 = vadd.s32 %v1710, %v1728
        %v1737 = vadd.s32 %v1711, %v1729
        %v1738 = vadd.s32 %v1712, %v1730
        %v1739 = vstv %s1518
        %vm1740 = vcmp.gt.f32.partialorder %v1630, %v1739
        %vm1741 = vcmp.gt.f32.partialorder %v1633, %v1739
        %vm1742 = vcmp.gt.f32.partialorder %v1638, %v1739
        %vm1743 = vcmp.gt.f32.partialorder %v1641, %v1739
        %vm1744 = vcmp.gt.f32.partialorder %v1646, %v1739
        %vm1745 = vcmp.gt.f32.partialorder %v1649, %v1739
        %vm1746 = vcmp.gt.f32.partialorder %v1654, %v1739
        %vm1747 = vcmp.gt.f32.partialorder %v1657, %v1739
        %v1748 = vstv %s1523
        %v1749 = vsel %vm1740, %v1748, 0
        %v1750 = vsel %vm1741, %v1748, 0
        %v1751 = vsel %vm1742, %v1748, 0
        %v1752 = vsel %vm1743, %v1748, 0
        %v1753 = vsel %vm1744, %v1748, 0
        %v1754 = vsel %vm1745, %v1748, 0
        %v1755 = vsel %vm1746, %v1748, 0
        %v1756 = vsel %vm1747, %v1748, 0
        %v1757 = vadd.s32 %v1731, %v1749
        %v1758 = vadd.s32 %v1732, %v1750
        %v1759 = vadd.s32 %v1733, %v1751
        %v1760 = vadd.s32 %v1734, %v1752
        %v1761 = vadd.s32 %v1735, %v1753
        %v1762 = vadd.s32 %v1736, %v1754
        %v1763 = vadd.s32 %v1737, %v1755
        %v1764 = vadd.s32 %v1738, %v1756
        %1765 = vst [vmem:[%s431] sm:$0xff] %v1757
        %1766 = vst [vmem:[%s431 + $0x8] sm:$0xff] %v1758
        %1767 = vst [vmem:[%s431 + $0x10] sm:$0xff] %v1759
        %1768 = vst [vmem:[%s431 + $0x18] sm:$0xff] %v1760
        %1769 = vst [vmem:[%s431 + $0x20] sm:$0xff] %v1761
        %1770 = vst [vmem:[%s431 + $0x28] sm:$0xff] %v1762
        %1771 = vst [vmem:[%s431 + $0x30] sm:$0xff] %v1763
        %1772 = vst [vmem:[%s431 + $0x38] sm:$0xff] %v1764
        %v1773 = vld [vmem:[%s9] sm:$0xf]
        %v1774 = vld [vmem:[%s9 + $0x4] sm:$0xf]
        %v1775 = vld [vmem:[%s9 + $0x8] sm:$0xf]
        %v1776 = vld [vmem:[%s9 + $0xc] sm:$0xf]
        %v1777 = vld [vmem:[%s9 + $0x10] sm:$0xf]
        %v1778 = vld [vmem:[%s9 + $0x14] sm:$0xf]
        %v1779 = vld [vmem:[%s9 + $0x18] sm:$0xf]
        %v1780 = vld [vmem:[%s9 + $0x1c] sm:$0xf]
        %v1781 = vld [vmem:[%s9 + $0x20] sm:$0xf]
        %v1782 = vld [vmem:[%s9 + $0x24] sm:$0xf]
        %v1783 = vld [vmem:[%s9 + $0x28] sm:$0xf]
        %v1784 = vld [vmem:[%s9 + $0x2c] sm:$0xf]
        %v1785 = vld [vmem:[%s9 + $0x30] sm:$0xf]
        %v1786 = vld [vmem:[%s9 + $0x34] sm:$0xf]
        %v1787 = vld [vmem:[%s9 + $0x38] sm:$0xf]
        %v1788 = vld [vmem:[%s9 + $0x3c] sm:$0xf]
        %v1789 = vld [vmem:[%s10] sm:$0x1]
        %v1791 = vlaneseq
        %v1792 = vshrl.u32 %v1791, 7
        %v1793 = vsub.s32 0, %v1792
        %v1794 = vrot.slane %v1789, %v1793
        %v1812 = vunpack.c.l.b16 %v1773
        %v1813 = vunpack.c.l.b16 %v1774
        %v1814 = vunpack.c.l.b16 %v1775
        %v1815 = vunpack.c.l.b16 %v1776
        %v1816 = vunpack.c.l.b16 %v1777
        %v1817 = vunpack.c.l.b16 %v1778
        %v1818 = vunpack.c.l.b16 %v1779
        %v1819 = vunpack.c.l.b16 %v1780
        %v1820 = vunpack.c.l.b16 %v1781
        %v1821 = vunpack.c.l.b16 %v1782
        %v1822 = vunpack.c.l.b16 %v1783
        %v1823 = vunpack.c.l.b16 %v1784
        %v1824 = vunpack.c.l.b16 %v1785
        %v1825 = vunpack.c.l.b16 %v1786
        %v1826 = vunpack.c.l.b16 %v1787
        %v1827 = vunpack.c.l.b16 %v1788
        %v1828 = vpack.c.b16 %v1813, %v1812
        %v1829 = vpack.c.b16 %v1815, %v1814
        %v1830 = vpack.c.b16 %v1817, %v1816
        %v1831 = vpack.c.b16 %v1819, %v1818
        %v1832 = vpack.c.b16 %v1821, %v1820
        %v1833 = vpack.c.b16 %v1823, %v1822
        %v1834 = vpack.c.b16 %v1825, %v1824
        %v1835 = vpack.c.b16 %v1827, %v1826
        %1844 = vmatprep.subr.bf16.mxu0 0
        %1845 = vmatpush1.bf16.msra.mxu0 %v1828
        %1846 = vmatprep.subr.bf16.mxu0 0
        %1847 = vmatpush1.bf16.msra.mxu0 %v1829
        %1848 = vmatprep.subr.bf16.mxu0 0
        %1849 = vmatpush1.bf16.msra.mxu0 %v1830
        %1850 = vmatprep.subr.bf16.mxu0 0
        %1851 = vmatpush1.bf16.msra.mxu0 %v1831
        %1852 = vmatprep.subr.bf16.mxu0 0
        %1853 = vmatpush1.bf16.msra.mxu0 %v1832
        %1854 = vmatprep.subr.bf16.mxu0 0
        %1855 = vmatpush1.bf16.msra.mxu0 %v1833
        %1856 = vmatprep.subr.bf16.mxu0 0
        %1857 = vmatpush1.bf16.msra.mxu0 %v1834
        %1858 = vmatprep.subr.bf16.mxu0 0
        %1859 = vmatpush1.bf16.msra.mxu0 %v1835
        %1860 = vmatprep.subr.bf16.mxu0 0
        %1861 = vmatpush1.bf16.msra.mxu0 0
        %1862 = vmatprep.subr.bf16.mxu0 0
        %1863 = vmatpush1.bf16.msra.mxu0 0
        %1864 = vmatprep.subr.bf16.mxu0 0
        %1865 = vmatpush1.bf16.msra.mxu0 0
        %1866 = vmatprep.subr.bf16.mxu0 0
        %1867 = vmatpush1.bf16.msra.mxu0 0
        %1868 = vmatprep.subr.bf16.mxu0 0
        %1869 = vmatpush1.bf16.msra.mxu0 0
        %1870 = vmatprep.subr.bf16.mxu0 0
        %1871 = vmatpush1.bf16.msra.mxu0 0
        %1872 = vmatprep.subr.bf16.mxu0 0
        %1873 = vmatpush1.bf16.msra.mxu0 0
        %1874 = vmatprep.subr.bf16.mxu0 0
        %1875 = vmatpush1.bf16.msra.mxu0 0
        %1876 = vmatprep.mubr.bf16.mxu0 0
        %1877 = vmatmul.mubr.bf16.gmra.mrb[0].mxu0 %v1503
        %v1878 = vpop.f32.mrb[0].mxu0
        %v1879 = vadd.f32 %v1794, %v1878
        %v1880 = vpop.f32.mrb[0].mxu0
        %v1881 = vpop.f32.mrb[0].mxu0
        %v1882 = vadd.f32 %v1794, %v1881
        %v1883 = vpop.f32.mrb[0].mxu0
        %1884 = vmatprep.mubr.bf16.mxu0 0
        %1885 = vmatmul.mubr.bf16.gmra.mrb[0].mxu0 %v1504
        %v1886 = vpop.f32.mrb[0].mxu0
        %v1887 = vadd.f32 %v1794, %v1886
        %v1888 = vpop.f32.mrb[0].mxu0
        %v1889 = vpop.f32.mrb[0].mxu0
        %v1890 = vadd.f32 %v1794, %v1889
        %v1891 = vpop.f32.mrb[0].mxu0
        %1892 = vmatprep.mubr.bf16.mxu0 0
        %1893 = vmatmul.mubr.bf16.gmra.mrb[0].mxu0 %v1505
        %v1894 = vpop.f32.mrb[0].mxu0
        %v1895 = vadd.f32 %v1794, %v1894
        %v1896 = vpop.f32.mrb[0].mxu0
        %v1897 = vpop.f32.mrb[0].mxu0
        %v1898 = vadd.f32 %v1794, %v1897
        %v1899 = vpop.f32.mrb[0].mxu0
        %1900 = vmatprep.mubr.bf16.mxu0 0
        %1901 = vmatmul.mubr.bf16.gmra.mrb[0].mxu0 %v1506
        %v1902 = vpop.f32.mrb[0].mxu0
        %v1903 = vadd.f32 %v1794, %v1902
        %v1904 = vpop.f32.mrb[0].mxu0
        %v1905 = vpop.f32.mrb[0].mxu0
        %v1906 = vadd.f32 %v1794, %v1905
        %v1907 = vpop.f32.mrb[0].mxu0
        %1908 = vdwg.mxu0
        %vm1909 = vcmp.gt.f32.partialorder %v1879, %v1661
        %vm1910 = vcmp.gt.f32.partialorder %v1882, %v1661
        %vm1911 = vcmp.gt.f32.partialorder %v1887, %v1661
        %vm1912 = vcmp.gt.f32.partialorder %v1890, %v1661
        %vm1913 = vcmp.gt.f32.partialorder %v1895, %v1661
        %vm1914 = vcmp.gt.f32.partialorder %v1898, %v1661
        %vm1915 = vcmp.gt.f32.partialorder %v1903, %v1661
        %vm1916 = vcmp.gt.f32.partialorder %v1906, %v1661
        %v1917 = vsel %vm1909, %v1670, 0
        %v1918 = vsel %vm1910, %v1670, 0
        %v1919 = vsel %vm1911, %v1670, 0
        %v1920 = vsel %vm1912, %v1670, 0
        %v1921 = vsel %vm1913, %v1670, 0
        %v1922 = vsel %vm1914, %v1670, 0
        %v1923 = vsel %vm1915, %v1670, 0
        %v1924 = vsel %vm1916, %v1670, 0
        %v1925 = vadd.s32 %v1660, %v1917
        %v1926 = vadd.s32 %v1660, %v1918
        %v1927 = vadd.s32 %v1660, %v1919
        %v1928 = vadd.s32 %v1660, %v1920
        %v1929 = vadd.s32 %v1660, %v1921
        %v1930 = vadd.s32 %v1660, %v1922
        %v1931 = vadd.s32 %v1660, %v1923
        %v1932 = vadd.s32 %v1660, %v1924
        %vm1933 = vcmp.gt.f32.partialorder %v1879, %v1687
        %vm1934 = vcmp.gt.f32.partialorder %v1882, %v1687
        %vm1935 = vcmp.gt.f32.partialorder %v1887, %v1687
        %vm1936 = vcmp.gt.f32.partialorder %v1890, %v1687
        %vm1937 = vcmp.gt.f32.partialorder %v1895, %v1687
        %vm1938 = vcmp.gt.f32.partialorder %v1898, %v1687
        %vm1939 = vcmp.gt.f32.partialorder %v1903, %v1687
        %vm1940 = vcmp.gt.f32.partialorder %v1906, %v1687
        %v1941 = vsel %vm1933, %v1696, 0
        %v1942 = vsel %vm1934, %v1696, 0
        %v1943 = vsel %vm1935, %v1696, 0
        %v1944 = vsel %vm1936, %v1696, 0
        %v1945 = vsel %vm1937, %v1696, 0
        %v1946 = vsel %vm1938, %v1696, 0
        %v1947 = vsel %vm1939, %v1696, 0
        %v1948 = vsel %vm1940, %v1696, 0
        %v1949 = vadd.s32 %v1925, %v1941
        %v1950 = vadd.s32 %v1926, %v1942
        %v1951 = vadd.s32 %v1927, %v1943
        %v1952 = vadd.s32 %v1928, %v1944
        %v1953 = vadd.s32 %v1929, %v1945
        %v1954 = vadd.s32 %v1930, %v1946
        %v1955 = vadd.s32 %v1931, %v1947
        %v1956 = vadd.s32 %v1932, %v1948
        %vm1957 = vcmp.gt.f32.partialorder %v1879, %v1713
        %vm1958 = vcmp.gt.f32.partialorder %v1882, %v1713
        %vm1959 = vcmp.gt.f32.partialorder %v1887, %v1713
        %vm1960 = vcmp.gt.f32.partialorder %v1890, %v1713
        %vm1961 = vcmp.gt.f32.partialorder %v1895, %v1713
        %vm1962 = vcmp.gt.f32.partialorder %v1898, %v1713
        %vm1963 = vcmp.gt.f32.partialorder %v1903, %v1713
        %vm1964 = vcmp.gt.f32.partialorder %v1906, %v1713
        %v1965 = vsel %vm1957, %v1722, 0
        %v1966 = vsel %vm1958, %v1722, 0
        %v1967 = vsel %vm1959, %v1722, 0
        %v1968 = vsel %vm1960, %v1722, 0
        %v1969 = vsel %vm1961, %v1722, 0
        %v1970 = vsel %vm1962, %v1722, 0
        %v1971 = vsel %vm1963, %v1722, 0
        %v1972 = vsel %vm1964, %v1722, 0
        %v1973 = vadd.s32 %v1949, %v1965
        %v1974 = vadd.s32 %v1950, %v1966
        %v1975 = vadd.s32 %v1951, %v1967
        %v1976 = vadd.s32 %v1952, %v1968
        %v1977 = vadd.s32 %v1953, %v1969
        %v1978 = vadd.s32 %v1954, %v1970
        %v1979 = vadd.s32 %v1955, %v1971
        %v1980 = vadd.s32 %v1956, %v1972
        %vm1981 = vcmp.gt.f32.partialorder %v1879, %v1739
        %vm1982 = vcmp.gt.f32.partialorder %v1882, %v1739
        %vm1983 = vcmp.gt.f32.partialorder %v1887, %v1739
        %vm1984 = vcmp.gt.f32.partialorder %v1890, %v1739
        %vm1985 = vcmp.gt.f32.partialorder %v1895, %v1739
        %vm1986 = vcmp.gt.f32.partialorder %v1898, %v1739
        %vm1987 = vcmp.gt.f32.partialorder %v1903, %v1739
        %vm1988 = vcmp.gt.f32.partialorder %v1906, %v1739
        %v1989 = vsel %vm1981, %v1748, 0
        %v1990 = vsel %vm1982, %v1748, 0
        %v1991 = vsel %vm1983, %v1748, 0
        %v1992 = vsel %vm1984, %v1748, 0
        %v1993 = vsel %vm1985, %v1748, 0
        %v1994 = vsel %vm1986, %v1748, 0
        %v1995 = vsel %vm1987, %v1748, 0
        %v1996 = vsel %vm1988, %v1748, 0
        %v1997 = vadd.s32 %v1973, %v1989
        %v1998 = vadd.s32 %v1974, %v1990
        %v1999 = vadd.s32 %v1975, %v1991
        %v2000 = vadd.s32 %v1976, %v1992
        %v2001 = vadd.s32 %v1977, %v1993
        %v2002 = vadd.s32 %v1978, %v1994
        %v2003 = vadd.s32 %v1979, %v1995
        %v2004 = vadd.s32 %v1980, %v1996
        %2005 = vst [vmem:[%s431 + $0x40] sm:$0xff] %v1997
        %2006 = vst [vmem:[%s431 + $0x48] sm:$0xff] %v1998
        %2007 = vst [vmem:[%s431 + $0x50] sm:$0xff] %v1999
        %2008 = vst [vmem:[%s431 + $0x58] sm:$0xff] %v2000
        %2009 = vst [vmem:[%s431 + $0x60] sm:$0xff] %v2001
        %2010 = vst [vmem:[%s431 + $0x68] sm:$0xff] %v2002
        %2011 = vst [vmem:[%s431 + $0x70] sm:$0xff] %v2003
        %2012 = vst [vmem:[%s431 + $0x78] sm:$0xff] %v2004
        %v2013 = vld [vmem:[%s9] sm:$0xf]
        %v2014 = vld [vmem:[%s9 + $0x4] sm:$0xf]
        %v2015 = vld [vmem:[%s9 + $0x8] sm:$0xf]
        %v2016 = vld [vmem:[%s9 + $0xc] sm:$0xf]
        %v2017 = vld [vmem:[%s9 + $0x10] sm:$0xf]
        %v2018 = vld [vmem:[%s9 + $0x14] sm:$0xf]
        %v2019 = vld [vmem:[%s9 + $0x18] sm:$0xf]
        %v2020 = vld [vmem:[%s9 + $0x1c] sm:$0xf]
        %v2021 = vld [vmem:[%s9 + $0x20] sm:$0xf]
        %v2022 = vld [vmem:[%s9 + $0x24] sm:$0xf]
        %v2023 = vld [vmem:[%s9 + $0x28] sm:$0xf]
        %v2024 = vld [vmem:[%s9 + $0x2c] sm:$0xf]
        %v2025 = vld [vmem:[%s9 + $0x30] sm:$0xf]
        %v2026 = vld [vmem:[%s9 + $0x34] sm:$0xf]
        %v2027 = vld [vmem:[%s9 + $0x38] sm:$0xf]
        %v2028 = vld [vmem:[%s9 + $0x3c] sm:$0xf]
        %v2029 = vld [vmem:[%s10] sm:$0x1]
        %v2031 = vlaneseq
        %v2032 = vshrl.u32 %v2031, 7
        %v2033 = vsub.s32 0, %v2032
        %v2034 = vrot.slane %v2029, %v2033
        %v2052 = vunpack.c.l.b16 %v2013
        %v2053 = vunpack.c.l.b16 %v2014
        %v2054 = vunpack.c.l.b16 %v2015
        %v2055 = vunpack.c.l.b16 %v2016
        %v2056 = vunpack.c.l.b16 %v2017
        %v2057 = vunpack.c.l.b16 %v2018
        %v2058 = vunpack.c.l.b16 %v2019
        %v2059 = vunpack.c.l.b16 %v2020
        %v2060 = vunpack.c.l.b16 %v2021
        %v2061 = vunpack.c.l.b16 %v2022
        %v2062 = vunpack.c.l.b16 %v2023
        %v2063 = vunpack.c.l.b16 %v2024
        %v2064 = vunpack.c.l.b16 %v2025
        %v2065 = vunpack.c.l.b16 %v2026
        %v2066 = vunpack.c.l.b16 %v2027
        %v2067 = vunpack.c.l.b16 %v2028
        %v2068 = vpack.c.b16 %v2053, %v2052
        %v2069 = vpack.c.b16 %v2055, %v2054
        %v2070 = vpack.c.b16 %v2057, %v2056
        %v2071 = vpack.c.b16 %v2059, %v2058
        %v2072 = vpack.c.b16 %v2061, %v2060
        %v2073 = vpack.c.b16 %v2063, %v2062
        %v2074 = vpack.c.b16 %v2065, %v2064
        %v2075 = vpack.c.b16 %v2067, %v2066
        %2084 = vmatprep.subr.bf16.mxu0 0
        %2085 = vmatpush1.bf16.msra.mxu0 %v2068
        %2086 = vmatprep.subr.bf16.mxu0 0
        %2087 = vmatpush1.bf16.msra.mxu0 %v2069
        %2088 = vmatprep.subr.bf16.mxu0 0
        %2089 = vmatpush1.bf16.msra.mxu0 %v2070
        %2090 = vmatprep.subr.bf16.mxu0 0
        %2091 = vmatpush1.bf16.msra.mxu0 %v2071
        %2092 = vmatprep.subr.bf16.mxu0 0
        %2093 = vmatpush1.bf16.msra.mxu0 %v2072
        %2094 = vmatprep.subr.bf16.mxu0 0
        %2095 = vmatpush1.bf16.msra.mxu0 %v2073
        %2096 = vmatprep.subr.bf16.mxu0 0
        %2097 = vmatpush1.bf16.msra.mxu0 %v2074
        %2098 = vmatprep.subr.bf16.mxu0 0
        %2099 = vmatpush1.bf16.msra.mxu0 %v2075
        %2100 = vmatprep.subr.bf16.mxu0 0
        %2101 = vmatpush1.bf16.msra.mxu0 0
        %2102 = vmatprep.subr.bf16.mxu0 0
        %2103 = vmatpush1.bf16.msra.mxu0 0
        %2104 = vmatprep.subr.bf16.mxu0 0
        %2105 = vmatpush1.bf16.msra.mxu0 0
        %2106 = vmatprep.subr.bf16.mxu0 0
        %2107 = vmatpush1.bf16.msra.mxu0 0
        %2108 = vmatprep.subr.bf16.mxu0 0
        %2109 = vmatpush1.bf16.msra.mxu0 0
        %2110 = vmatprep.subr.bf16.mxu0 0
        %2111 = vmatpush1.bf16.msra.mxu0 0
        %2112 = vmatprep.subr.bf16.mxu0 0
        %2113 = vmatpush1.bf16.msra.mxu0 0
        %2114 = vmatprep.subr.bf16.mxu0 0
        %2115 = vmatpush1.bf16.msra.mxu0 0
        %2116 = vmatprep.mubr.bf16.mxu0 0
        %2117 = vmatmul.mubr.bf16.gmra.mrb[0].mxu0 %v1507
        %v2118 = vpop.f32.mrb[0].mxu0
        %v2119 = vadd.f32 %v2034, %v2118
        %v2120 = vpop.f32.mrb[0].mxu0
        %v2121 = vpop.f32.mrb[0].mxu0
        %v2122 = vadd.f32 %v2034, %v2121
        %v2123 = vpop.f32.mrb[0].mxu0
        %2124 = vmatprep.mubr.bf16.mxu0 0
        %2125 = vmatmul.mubr.bf16.gmra.mrb[0].mxu0 %v1508
        %v2126 = vpop.f32.mrb[0].mxu0
        %v2127 = vadd.f32 %v2034, %v2126
        %v2128 = vpop.f32.mrb[0].mxu0
        %v2129 = vpop.f32.mrb[0].mxu0
        %v2130 = vadd.f32 %v2034, %v2129
        %v2131 = vpop.f32.mrb[0].mxu0
        %2132 = vmatprep.mubr.bf16.mxu0 0
        %2133 = vmatmul.mubr.bf16.gmra.mrb[0].mxu0 %v1509
        %v2134 = vpop.f32.mrb[0].mxu0
        %v2135 = vadd.f32 %v2034, %v2134
        %v2136 = vpop.f32.mrb[0].mxu0
        %v2137 = vpop.f32.mrb[0].mxu0
        %v2138 = vadd.f32 %v2034, %v2137
        %v2139 = vpop.f32.mrb[0].mxu0
        %2140 = vmatprep.mubr.bf16.mxu0 0
        %2141 = vmatmul.mubr.bf16.gmra.mrb[0].mxu0 %v1510
        %v2142 = vpop.f32.mrb[0].mxu0
        %v2143 = vadd.f32 %v2034, %v2142
        %v2144 = vpop.f32.mrb[0].mxu0
        %v2145 = vpop.f32.mrb[0].mxu0
        %v2146 = vadd.f32 %v2034, %v2145
        %v2147 = vpop.f32.mrb[0].mxu0
        %2148 = vdwg.mxu0
        %vm2149 = vcmp.gt.f32.partialorder %v2119, %v1661
        %vm2150 = vcmp.gt.f32.partialorder %v2122, %v1661
        %vm2151 = vcmp.gt.f32.partialorder %v2127, %v1661
        %vm2152 = vcmp.gt.f32.partialorder %v2130, %v1661
        %vm2153 = vcmp.gt.f32.partialorder %v2135, %v1661
        %vm2154 = vcmp.gt.f32.partialorder %v2138, %v1661
        %vm2155 = vcmp.gt.f32.partialorder %v2143, %v1661
        %vm2156 = vcmp.gt.f32.partialorder %v2146, %v1661
        %v2157 = vsel %vm2149, %v1670, 0
        %v2158 = vsel %vm2150, %v1670, 0
        %v2159 = vsel %vm2151, %v1670, 0
        %v2160 = vsel %vm2152, %v1670, 0
        %v2161 = vsel %vm2153, %v1670, 0
        %v2162 = vsel %vm2154, %v1670, 0
        %v2163 = vsel %vm2155, %v1670, 0
        %v2164 = vsel %vm2156, %v1670, 0
        %v2165 = vadd.s32 %v1660, %v2157
        %v2166 = vadd.s32 %v1660, %v2158
        %v2167 = vadd.s32 %v1660, %v2159
        %v2168 = vadd.s32 %v1660, %v2160
        %v2169 = vadd.s32 %v1660, %v2161
        %v2170 = vadd.s32 %v1660, %v2162
        %v2171 = vadd.s32 %v1660, %v2163
        %v2172 = vadd.s32 %v1660, %v2164
        %vm2173 = vcmp.gt.f32.partialorder %v2119, %v1687
        %vm2174 = vcmp.gt.f32.partialorder %v2122, %v1687
        %vm2175 = vcmp.gt.f32.partialorder %v2127, %v1687
        %vm2176 = vcmp.gt.f32.partialorder %v2130, %v1687
        %vm2177 = vcmp.gt.f32.partialorder %v2135, %v1687
        %vm2178 = vcmp.gt.f32.partialorder %v2138, %v1687
        %vm2179 = vcmp.gt.f32.partialorder %v2143, %v1687
        %vm2180 = vcmp.gt.f32.partialorder %v2146, %v1687
        %v2181 = vsel %vm2173, %v1696, 0
        %v2182 = vsel %vm2174, %v1696, 0
        %v2183 = vsel %vm2175, %v1696, 0
        %v2184 = vsel %vm2176, %v1696, 0
        %v2185 = vsel %vm2177, %v1696, 0
        %v2186 = vsel %vm2178, %v1696, 0
        %v2187 = vsel %vm2179, %v1696, 0
        %v2188 = vsel %vm2180, %v1696, 0
        %v2189 = vadd.s32 %v2165, %v2181
        %v2190 = vadd.s32 %v2166, %v2182
        %v2191 = vadd.s32 %v2167, %v2183
        %v2192 = vadd.s32 %v2168, %v2184
        %v2193 = vadd.s32 %v2169, %v2185
        %v2194 = vadd.s32 %v2170, %v2186
        %v2195 = vadd.s32 %v2171, %v2187
        %v2196 = vadd.s32 %v2172, %v2188
        %vm2197 = vcmp.gt.f32.partialorder %v2119, %v1713
        %vm2198 = vcmp.gt.f32.partialorder %v2122, %v1713
        %vm2199 = vcmp.gt.f32.partialorder %v2127, %v1713
        %vm2200 = vcmp.gt.f32.partialorder %v2130, %v1713
        %vm2201 = vcmp.gt.f32.partialorder %v2135, %v1713
        %vm2202 = vcmp.gt.f32.partialorder %v2138, %v1713
        %vm2203 = vcmp.gt.f32.partialorder %v2143, %v1713
        %vm2204 = vcmp.gt.f32.partialorder %v2146, %v1713
        %v2205 = vsel %vm2197, %v1722, 0
        %v2206 = vsel %vm2198, %v1722, 0
        %v2207 = vsel %vm2199, %v1722, 0
        %v2208 = vsel %vm2200, %v1722, 0
        %v2209 = vsel %vm2201, %v1722, 0
        %v2210 = vsel %vm2202, %v1722, 0
        %v2211 = vsel %vm2203, %v1722, 0
        %v2212 = vsel %vm2204, %v1722, 0
        %v2213 = vadd.s32 %v2189, %v2205
        %v2214 = vadd.s32 %v2190, %v2206
        %v2215 = vadd.s32 %v2191, %v2207
        %v2216 = vadd.s32 %v2192, %v2208
        %v2217 = vadd.s32 %v2193, %v2209
        %v2218 = vadd.s32 %v2194, %v2210
        %v2219 = vadd.s32 %v2195, %v2211
        %v2220 = vadd.s32 %v2196, %v2212
        %vm2221 = vcmp.gt.f32.partialorder %v2119, %v1739
        %vm2222 = vcmp.gt.f32.partialorder %v2122, %v1739
        %vm2223 = vcmp.gt.f32.partialorder %v2127, %v1739
        %vm2224 = vcmp.gt.f32.partialorder %v2130, %v1739
        %vm2225 = vcmp.gt.f32.partialorder %v2135, %v1739
        %vm2226 = vcmp.gt.f32.partialorder %v2138, %v1739
        %vm2227 = vcmp.gt.f32.partialorder %v2143, %v1739
        %vm2228 = vcmp.gt.f32.partialorder %v2146, %v1739
        %v2229 = vsel %vm2221, %v1748, 0
        %v2230 = vsel %vm2222, %v1748, 0
        %v2231 = vsel %vm2223, %v1748, 0
        %v2232 = vsel %vm2224, %v1748, 0
        %v2233 = vsel %vm2225, %v1748, 0
        %v2234 = vsel %vm2226, %v1748, 0
        %v2235 = vsel %vm2227, %v1748, 0
        %v2236 = vsel %vm2228, %v1748, 0
        %v2237 = vadd.s32 %v2213, %v2229
        %v2238 = vadd.s32 %v2214, %v2230
        %v2239 = vadd.s32 %v2215, %v2231
        %v2240 = vadd.s32 %v2216, %v2232
        %v2241 = vadd.s32 %v2217, %v2233
        %v2242 = vadd.s32 %v2218, %v2234
        %v2243 = vadd.s32 %v2219, %v2235
        %v2244 = vadd.s32 %v2220, %v2236
        %2245 = vst [vmem:[%s431 + $0x80] sm:$0xff] %v2237
        %2246 = vst [vmem:[%s431 + $0x88] sm:$0xff] %v2238
        %2247 = vst [vmem:[%s431 + $0x90] sm:$0xff] %v2239
        %2248 = vst [vmem:[%s431 + $0x98] sm:$0xff] %v2240
        %2249 = vst [vmem:[%s431 + $0xa0] sm:$0xff] %v2241
        %2250 = vst [vmem:[%s431 + $0xa8] sm:$0xff] %v2242
        %2251 = vst [vmem:[%s431 + $0xb0] sm:$0xff] %v2243
        %2252 = vst [vmem:[%s431 + $0xb8] sm:$0xff] %v2244
        %v2253 = vld [vmem:[%s9] sm:$0xf]
        %v2254 = vld [vmem:[%s9 + $0x4] sm:$0xf]
        %v2255 = vld [vmem:[%s9 + $0x8] sm:$0xf]
        %v2256 = vld [vmem:[%s9 + $0xc] sm:$0xf]
        %v2257 = vld [vmem:[%s9 + $0x10] sm:$0xf]
        %v2258 = vld [vmem:[%s9 + $0x14] sm:$0xf]
        %v2259 = vld [vmem:[%s9 + $0x18] sm:$0xf]
        %v2260 = vld [vmem:[%s9 + $0x1c] sm:$0xf]
        %v2261 = vld [vmem:[%s9 + $0x20] sm:$0xf]
        %v2262 = vld [vmem:[%s9 + $0x24] sm:$0xf]
        %v2263 = vld [vmem:[%s9 + $0x28] sm:$0xf]
        %v2264 = vld [vmem:[%s9 + $0x2c] sm:$0xf]
        %v2265 = vld [vmem:[%s9 + $0x30] sm:$0xf]
        %v2266 = vld [vmem:[%s9 + $0x34] sm:$0xf]
        %v2267 = vld [vmem:[%s9 + $0x38] sm:$0xf]
        %v2268 = vld [vmem:[%s9 + $0x3c] sm:$0xf]
        %v2269 = vld [vmem:[%s10] sm:$0x1]
        %v2271 = vlaneseq
        %v2272 = vshrl.u32 %v2271, 7
        %v2273 = vsub.s32 0, %v2272
        %v2274 = vrot.slane %v2269, %v2273
        %v2292 = vunpack.c.l.b16 %v2253
        %v2293 = vunpack.c.l.b16 %v2254
        %v2294 = vunpack.c.l.b16 %v2255
        %v2295 = vunpack.c.l.b16 %v2256
        %v2296 = vunpack.c.l.b16 %v2257
        %v2297 = vunpack.c.l.b16 %v2258
        %v2298 = vunpack.c.l.b16 %v2259
        %v2299 = vunpack.c.l.b16 %v2260
        %v2300 = vunpack.c.l.b16 %v2261
        %v2301 = vunpack.c.l.b16 %v2262
        %v2302 = vunpack.c.l.b16 %v2263
        %v2303 = vunpack.c.l.b16 %v2264
        %v2304 = vunpack.c.l.b16 %v2265
        %v2305 = vunpack.c.l.b16 %v2266
        %v2306 = vunpack.c.l.b16 %v2267
        %v2307 = vunpack.c.l.b16 %v2268
        %v2308 = vpack.c.b16 %v2293, %v2292
        %v2309 = vpack.c.b16 %v2295, %v2294
        %v2310 = vpack.c.b16 %v2297, %v2296
        %v2311 = vpack.c.b16 %v2299, %v2298
        %v2312 = vpack.c.b16 %v2301, %v2300
        %v2313 = vpack.c.b16 %v2303, %v2302
        %v2314 = vpack.c.b16 %v2305, %v2304
        %v2315 = vpack.c.b16 %v2307, %v2306
        %2324 = vmatprep.subr.bf16.mxu0 0
        %2325 = vmatpush1.bf16.msra.mxu0 %v2308
        %2326 = vmatprep.subr.bf16.mxu0 0
        %2327 = vmatpush1.bf16.msra.mxu0 %v2309
        %2328 = vmatprep.subr.bf16.mxu0 0
        %2329 = vmatpush1.bf16.msra.mxu0 %v2310
        %2330 = vmatprep.subr.bf16.mxu0 0
        %2331 = vmatpush1.bf16.msra.mxu0 %v2311
        %2332 = vmatprep.subr.bf16.mxu0 0
        %2333 = vmatpush1.bf16.msra.mxu0 %v2312
        %2334 = vmatprep.subr.bf16.mxu0 0
        %2335 = vmatpush1.bf16.msra.mxu0 %v2313
        %2336 = vmatprep.subr.bf16.mxu0 0
        %2337 = vmatpush1.bf16.msra.mxu0 %v2314
        %2338 = vmatprep.subr.bf16.mxu0 0
        %2339 = vmatpush1.bf16.msra.mxu0 %v2315
        %2340 = vmatprep.subr.bf16.mxu0 0
        %2341 = vmatpush1.bf16.msra.mxu0 0
        %2342 = vmatprep.subr.bf16.mxu0 0
        %2343 = vmatpush1.bf16.msra.mxu0 0
        %2344 = vmatprep.subr.bf16.mxu0 0
        %2345 = vmatpush1.bf16.msra.mxu0 0
        %2346 = vmatprep.subr.bf16.mxu0 0
        %2347 = vmatpush1.bf16.msra.mxu0 0
        %2348 = vmatprep.subr.bf16.mxu0 0
        %2349 = vmatpush1.bf16.msra.mxu0 0
        %2350 = vmatprep.subr.bf16.mxu0 0
        %2351 = vmatpush1.bf16.msra.mxu0 0
        %2352 = vmatprep.subr.bf16.mxu0 0
        %2353 = vmatpush1.bf16.msra.mxu0 0
        %2354 = vmatprep.subr.bf16.mxu0 0
        %2355 = vmatpush1.bf16.msra.mxu0 0
        %2356 = vmatprep.mubr.bf16.mxu0 0
        %2357 = vmatmul.mubr.bf16.gmra.mrb[0].mxu0 %v1511
        %v2358 = vpop.f32.mrb[0].mxu0
        %v2359 = vadd.f32 %v2274, %v2358
        %v2360 = vpop.f32.mrb[0].mxu0
        %v2361 = vpop.f32.mrb[0].mxu0
        %v2362 = vadd.f32 %v2274, %v2361
        %v2363 = vpop.f32.mrb[0].mxu0
        %2364 = vmatprep.mubr.bf16.mxu0 0
        %2365 = vmatmul.mubr.bf16.gmra.mrb[0].mxu0 %v1512
        %v2366 = vpop.f32.mrb[0].mxu0
        %v2367 = vadd.f32 %v2274, %v2366
        %v2368 = vpop.f32.mrb[0].mxu0
        %v2369 = vpop.f32.mrb[0].mxu0
        %v2370 = vadd.f32 %v2274, %v2369
        %v2371 = vpop.f32.mrb[0].mxu0
        %2372 = vmatprep.mubr.bf16.mxu0 0
        %2373 = vmatmul.mubr.bf16.gmra.mrb[0].mxu0 %v1513
        %v2374 = vpop.f32.mrb[0].mxu0
        %v2375 = vadd.f32 %v2274, %v2374
        %v2376 = vpop.f32.mrb[0].mxu0
        %v2377 = vpop.f32.mrb[0].mxu0
        %v2378 = vadd.f32 %v2274, %v2377
        %v2379 = vpop.f32.mrb[0].mxu0
        %2380 = vmatprep.mubr.bf16.mxu0 0
        %2381 = vmatmul.mubr.bf16.gmra.mrb[0].mxu0 %v1514
        %v2382 = vpop.f32.mrb[0].mxu0
        %v2383 = vadd.f32 %v2274, %v2382
        %v2384 = vpop.f32.mrb[0].mxu0
        %v2385 = vpop.f32.mrb[0].mxu0
        %v2386 = vadd.f32 %v2274, %v2385
        %v2387 = vpop.f32.mrb[0].mxu0
        %2388 = vdwg.mxu0
        %vm2389 = vcmp.gt.f32.partialorder %v2359, %v1661
        %vm2390 = vcmp.gt.f32.partialorder %v2362, %v1661
        %vm2391 = vcmp.gt.f32.partialorder %v2367, %v1661
        %vm2392 = vcmp.gt.f32.partialorder %v2370, %v1661
        %vm2393 = vcmp.gt.f32.partialorder %v2375, %v1661
        %vm2394 = vcmp.gt.f32.partialorder %v2378, %v1661
        %vm2395 = vcmp.gt.f32.partialorder %v2383, %v1661
        %vm2396 = vcmp.gt.f32.partialorder %v2386, %v1661
        %v2397 = vsel %vm2389, %v1670, 0
        %v2398 = vsel %vm2390, %v1670, 0
        %v2399 = vsel %vm2391, %v1670, 0
        %v2400 = vsel %vm2392, %v1670, 0
        %v2401 = vsel %vm2393, %v1670, 0
        %v2402 = vsel %vm2394, %v1670, 0
        %v2403 = vsel %vm2395, %v1670, 0
        %v2404 = vsel %vm2396, %v1670, 0
        %v2405 = vadd.s32 %v1660, %v2397
        %v2406 = vadd.s32 %v1660, %v2398
        %v2407 = vadd.s32 %v1660, %v2399
        %v2408 = vadd.s32 %v1660, %v2400
        %v2409 = vadd.s32 %v1660, %v2401
        %v2410 = vadd.s32 %v1660, %v2402
        %v2411 = vadd.s32 %v1660, %v2403
        %v2412 = vadd.s32 %v1660, %v2404
        %vm2413 = vcmp.gt.f32.partialorder %v2359, %v1687
        %vm2414 = vcmp.gt.f32.partialorder %v2362, %v1687
        %vm2415 = vcmp.gt.f32.partialorder %v2367, %v1687
        %vm2416 = vcmp.gt.f32.partialorder %v2370, %v1687
        %vm2417 = vcmp.gt.f32.partialorder %v2375, %v1687
        %vm2418 = vcmp.gt.f32.partialorder %v2378, %v1687
        %vm2419 = vcmp.gt.f32.partialorder %v2383, %v1687
        %vm2420 = vcmp.gt.f32.partialorder %v2386, %v1687
        %v2421 = vsel %vm2413, %v1696, 0
        %v2422 = vsel %vm2414, %v1696, 0
        %v2423 = vsel %vm2415, %v1696, 0
        %v2424 = vsel %vm2416, %v1696, 0
        %v2425 = vsel %vm2417, %v1696, 0
        %v2426 = vsel %vm2418, %v1696, 0
        %v2427 = vsel %vm2419, %v1696, 0
        %v2428 = vsel %vm2420, %v1696, 0
        %v2429 = vadd.s32 %v2405, %v2421
        %v2430 = vadd.s32 %v2406, %v2422
        %v2431 = vadd.s32 %v2407, %v2423
        %v2432 = vadd.s32 %v2408, %v2424
        %v2433 = vadd.s32 %v2409, %v2425
        %v2434 = vadd.s32 %v2410, %v2426
        %v2435 = vadd.s32 %v2411, %v2427
        %v2436 = vadd.s32 %v2412, %v2428
        %vm2437 = vcmp.gt.f32.partialorder %v2359, %v1713
        %vm2438 = vcmp.gt.f32.partialorder %v2362, %v1713
        %vm2439 = vcmp.gt.f32.partialorder %v2367, %v1713
        %vm2440 = vcmp.gt.f32.partialorder %v2370, %v1713
        %vm2441 = vcmp.gt.f32.partialorder %v2375, %v1713
        %vm2442 = vcmp.gt.f32.partialorder %v2378, %v1713
        %vm2443 = vcmp.gt.f32.partialorder %v2383, %v1713
        %vm2444 = vcmp.gt.f32.partialorder %v2386, %v1713
        %v2445 = vsel %vm2437, %v1722, 0
        %v2446 = vsel %vm2438, %v1722, 0
        %v2447 = vsel %vm2439, %v1722, 0
        %v2448 = vsel %vm2440, %v1722, 0
        %v2449 = vsel %vm2441, %v1722, 0
        %v2450 = vsel %vm2442, %v1722, 0
        %v2451 = vsel %vm2443, %v1722, 0
        %v2452 = vsel %vm2444, %v1722, 0
        %v2453 = vadd.s32 %v2429, %v2445
        %v2454 = vadd.s32 %v2430, %v2446
        %v2455 = vadd.s32 %v2431, %v2447
        %v2456 = vadd.s32 %v2432, %v2448
        %v2457 = vadd.s32 %v2433, %v2449
        %v2458 = vadd.s32 %v2434, %v2450
        %v2459 = vadd.s32 %v2435, %v2451
        %v2460 = vadd.s32 %v2436, %v2452
        %vm2461 = vcmp.gt.f32.partialorder %v2359, %v1739
        %vm2462 = vcmp.gt.f32.partialorder %v2362, %v1739
        %vm2463 = vcmp.gt.f32.partialorder %v2367, %v1739
        %vm2464 = vcmp.gt.f32.partialorder %v2370, %v1739
        %vm2465 = vcmp.gt.f32.partialorder %v2375, %v1739
        %vm2466 = vcmp.gt.f32.partialorder %v2378, %v1739
        %vm2467 = vcmp.gt.f32.partialorder %v2383, %v1739
        %vm2468 = vcmp.gt.f32.partialorder %v2386, %v1739
        %v2469 = vsel %vm2461, %v1748, 0
        %v2470 = vsel %vm2462, %v1748, 0
        %v2471 = vsel %vm2463, %v1748, 0
        %v2472 = vsel %vm2464, %v1748, 0
        %v2473 = vsel %vm2465, %v1748, 0
        %v2474 = vsel %vm2466, %v1748, 0
        %v2475 = vsel %vm2467, %v1748, 0
        %v2476 = vsel %vm2468, %v1748, 0
        %v2477 = vadd.s32 %v2453, %v2469
        %v2478 = vadd.s32 %v2454, %v2470
        %v2479 = vadd.s32 %v2455, %v2471
        %v2480 = vadd.s32 %v2456, %v2472
        %v2481 = vadd.s32 %v2457, %v2473
        %v2482 = vadd.s32 %v2458, %v2474
        %v2483 = vadd.s32 %v2459, %v2475
        %v2484 = vadd.s32 %v2460, %v2476
        %2485 = vst [vmem:[%s431 + $0xc0] sm:$0xff] %v2477
        %2486 = vst [vmem:[%s431 + $0xc8] sm:$0xff] %v2478
        %2487 = vst [vmem:[%s431 + $0xd0] sm:$0xff] %v2479
        %2488 = vst [vmem:[%s431 + $0xd8] sm:$0xff] %v2480
        %2489 = vst [vmem:[%s431 + $0xe0] sm:$0xff] %v2481
        %2490 = vst [vmem:[%s431 + $0xe8] sm:$0xff] %v2482
        %2491 = vst [vmem:[%s431 + $0xf0] sm:$0xff] %v2483
        %2492 = vst [vmem:[%s431 + $0xf8] sm:$0xff] %v2484
        %s2493 = sand.u32 %s274, 1
        %s2494 = scalar_lea.sflag [#allocation4], %s2493
        %s2495 = sand.u32 %s274, 1
        %s2496 = smul.addr %s2495, 256
        %s2497 = scalar_lea.vmem [#allocation9], %s2496
        // Predicated region
        $region77: #{generator_forward.1} parent=63 // pred_check
          %p2498 = pneg %p284
        $region78: #{generator_forward.1} parent=63 // pred_check_branch
          %2500 = sbr.rel (%p2498) target = $region80
        $region79: #{generator_forward.1} parent=63 // pred_region
          %s2501 = smul.u32 32, %s30
          %s2503 = ssub.s32 4096, 4096
          %2504 = vsyncadd %s2494, %s2503
          %s2505 = smul.addr %s2501, 128
          %s2506 = scalar_lea.hbm %s11, %s2505
          %s2507 = sshll.u32 %s2497, 4
          %s2508 = int_to_ptr.vmem [resolvable:$true] %s2507
          %2513 = dma.vmem_to_hbm [thread:$0]  %s2508, 4096, %s2506, %s2494, 128, 128, 8
        $region80: #{generator_forward.1} parent=63 // pred_fallthru
          _
      $region64: #{generator_forward.1} parent=5 // pred_fallthru
        _
      %p2514 = scmp.le.s32.totalorder 2, %s25
      // Predicated region
      $region81: #{generator_forward.1} parent=5 // pred_check
        %p2515 = pneg %p2514
      $region82: #{generator_forward.1} parent=5 // pred_check_branch
        %2517 = sbr.rel (%p2515) target = $region84
      $region83: #{generator_forward.1} parent=5 // pred_region
        %s2518 = ssub.s32 %s25, 2
        // Predicated region
        $region85: #{generator_forward.1} parent=83 // pred_check
          %p2519 = pneg %p290
        $region86: #{generator_forward.1} parent=83 // pred_check_branch
          %2521 = sbr.rel (%p2519) target = $region88
        $region87: #{generator_forward.1} parent=83 // pred_region
          %s2522 = sand.u32 %s275, 1
          %s2523 = scalar_lea.sflag [#allocation4], %s2522
          %s2524 = sand.u32 %s275, 1
          %s2525 = smul.addr %s2524, 256
          %s2526 = scalar_lea.vmem [#allocation9], %s2525
          %2527 = dma.done %s2523, 4096
        $region88: #{generator_forward.1} parent=83 // pred_fallthru
          _
      $region84: #{generator_forward.1} parent=5 // pred_fallthru
        _
    $region6: #{generator_forward.1} parent=1 // loop_footer
      %s29 = sadd.s32 1, %s25
    $region7: #{generator_forward.1} parent=1 // loop_footer_branch
      %24 = sbr.rel target = $region3
    $region8: #{generator_forward.1} parent=1 // loop_exit
      _
    %2528 = vsyncpa [#allocation3], 1
    %s2529 = scalar_lea.sflag [#allocation3], 1
    %2530 = vsyncpa %s2529, 1
    %2531 = vsyncpa [#allocation4], 1
    %s2532 = scalar_lea.sflag [#allocation4], 1
    %2533 = vsyncpa %s2532, 1
    %2534 = vsyncpa [#allocation5], 1
    %s2535 = scalar_lea.sflag [#allocation5], 1
    %2536 = vsyncpa %s2535, 1
    %2537 = vsyncpa [#allocation7], 1

</llo_original>
